<compile_context>
chip_gen: v5e
topology: v5e:2x2
jax: 0.10.0
libtpu: 0.0.40
codegen_flags: <defaults>
</compile_context>

<pallas_src>
import functools
import math

import jax
import jax.numpy as jnp
from jax import lax
from jax.experimental import pallas as pl
from jax.experimental.pallas import tpu as pltpu


# Contract the LAST axis of lhs with the LAST axis of rhs (PyTorch x @ W.T
# without materializing a transpose — Mosaic feeds the MXU directly).
_DN_LAST = (((1,), (1,)), ((), ()))
_VMEM_LIMIT = 64 * 1024 * 1024


def _pick_tile(m, target=256):
    """Largest tile <= target that divides m and is a multiple of 8 (else m)."""
    if m <= target:
        return m
    t = (target // 8) * 8
    while t >= 8:
        if m % t == 0:
            return t
        t -= 8
    return m


def _pick_div(n, target):
    """Largest divisor of n that is <= target (>= 1)."""
    target = max(1, min(n, target))
    for d in range(target, 0, -1):
        if n % d == 0:
            return d
    return 1


# ----------------------------------------------------------------------------
# Fused LoRA-injected linear.
#   out[i]   = (x @ A_i^T) @ B_i^T * scaling                      i = 0..L-1
#   out[L]   = x @ W^T + b + sum_i out[i]                         ('org')
# ----------------------------------------------------------------------------
def _lora_linear_kernel(scaling, num_lora, r, x_ref, w_ref, bias_ref,
                        a_all_ref, b_stack_ref, out_ref):
    x = x_ref[...]                                                # (TM, K)

    # Base projection in f32; bias folded into the accumulator exactly once.
    acc = lax.dot_general(x, w_ref[...], _DN_LAST,
                          preferred_element_type=jnp.float32)     # (TM, N)
    acc = acc + bias_ref[...].astype(jnp.float32)

    # All LoRA "A" branches batched into one lane-dense matmul: (TM, L*r).
    feat_all = lax.dot_general(x, a_all_ref[...], _DN_LAST,
                               preferred_element_type=jnp.float32)
    feat_all = feat_all.astype(x.dtype)

    for i in range(num_lora):
        feat_i = feat_all[:, i * r:(i + 1) * r]                   # (TM, r)
        lora_f32 = lax.dot_general(feat_i, b_stack_ref[i], _DN_LAST,
                                   preferred_element_type=jnp.float32)
        lora_f32 = lora_f32 * scaling                             # (TM, N)
        out_ref[i] = lora_f32.astype(out_ref.dtype)               # single cast/store
        acc = acc + lora_f32                                      # f32 accumulation

    out_ref[num_lora] = acc.astype(out_ref.dtype)                 # 'org' slot


def lora_injected_linear(x2d, w, bias, a_stack, b_stack, *, lora_alpha, r, tm=256):
    """x2d: [M, K]; w: [N, K]; bias: [N]; a_stack: [L, r, K]; b_stack: [L, N, r].

    Returns a stacked array [L+1, M, N]: slot i<L is LoRA branch i (scaled),
    slot L is 'org' (base + bias + sum of branches)."""
    M, K = x2d.shape
    N = w.shape[0]
    L = a_stack.shape[0]
    scaling = float(lora_alpha) / float(r)
    TM = _pick_tile(M, tm)

    a_all = a_stack.reshape(L * r, K)
    bias2d = bias.reshape(1, N)
    kernel = functools.partial(_lora_linear_kernel, scaling, L, r)

    return pl.pallas_call(
        kernel,
        out_shape=jax.ShapeDtypeStruct((L + 1, M, N), x2d.dtype),
        grid_spec=pltpu.PrefetchScalarGridSpec(
            num_scalar_prefetch=0,
            grid=(M // TM,),
            in_specs=[
                pl.BlockSpec((TM, K), lambda m: (m, 0)),          # x tile
                pl.BlockSpec((N, K), lambda m: (0, 0)),           # W (resident)
                pl.BlockSpec((1, N), lambda m: (0, 0)),           # bias
                pl.BlockSpec((L * r, K), lambda m: (0, 0)),       # stacked A
                pl.BlockSpec((L, N, r), lambda m: (0, 0, 0)),     # stacked B
            ],
            out_specs=pl.BlockSpec((L + 1, TM, N), lambda m: (0, m, 0)),
        ),
        compiler_params=pltpu.CompilerParams(
            dimension_semantics=("parallel",),                    # M tiles independent
            vmem_limit_bytes=_VMEM_LIMIT,
        ),
    )(x2d, w, bias2d, a_all, b_stack)


# ----------------------------------------------------------------------------
# Plain linear (k_proj, out_proj): y = x @ W^T + b
# ----------------------------------------------------------------------------
def _linear_kernel(x_ref, w_ref, bias_ref, out_ref):
    acc = lax.dot_general(x_ref[...], w_ref[...], _DN_LAST,
                          preferred_element_type=jnp.float32)
    out_ref[...] = (acc + bias_ref[...].astype(jnp.float32)).astype(out_ref.dtype)


def linear(x2d, w, bias, *, tm=256):
    M, K = x2d.shape
    N = w.shape[0]
    TM = _pick_tile(M, tm)
    return pl.pallas_call(
        _linear_kernel,
        out_shape=jax.ShapeDtypeStruct((M, N), x2d.dtype),
        grid_spec=pltpu.PrefetchScalarGridSpec(
            num_scalar_prefetch=0,
            grid=(M // TM,),
            in_specs=[
                pl.BlockSpec((TM, K), lambda m: (m, 0)),
                pl.BlockSpec((N, K), lambda m: (0, 0)),
                pl.BlockSpec((1, N), lambda m: (0, 0)),
            ],
            out_specs=pl.BlockSpec((TM, N), lambda m: (m, 0)),
        ),
        compiler_params=pltpu.CompilerParams(
            dimension_semantics=("parallel",),
            vmem_limit_bytes=_VMEM_LIMIT,
        ),
    )(x2d, w, bias.reshape(1, N))


# ----------------------------------------------------------------------------
# Attention (need_weights=True path), batched over LoRA branches and heads:
#   weights = softmax((q * sqrt(1/D)) @ k^T);  out = weights @ v
# Head-averaged weights (average_attn_weights=True) are produced in-kernel.
# ----------------------------------------------------------------------------
def _attention_kernel(scale, num_heads, q_ref, k_ref, v_ref, w_ref, o_ref):
    q = q_ref[0].astype(jnp.float32) * scale                      # (bt*H, T, D)
    k = k_ref[...].astype(jnp.float32)                            # (bt*H, S, D)
    scores = jnp.einsum('bqd,bkd->bqk', q, k,
                        preferred_element_type=jnp.float32)       # (bt*H, T, S)
    scores = scores - jnp.max(scores, axis=-1, keepdims=True)
    p = jnp.exp(scores)
    p = p / jnp.sum(p, axis=-1, keepdims=True)

    # average_attn_weights=True -> mean over heads, done in-kernel (H x less
    # HBM writeback for the weights output).
    bt = p.shape[0] // num_heads
    p_avg = p.reshape(bt, num_heads, p.shape[1], p.shape[2]).mean(axis=1)
    w_ref[0] = p_avg.astype(w_ref.dtype)

    v = v_ref[0]                                                  # (bt*H, S, D)
    o = jnp.einsum('bqk,bkd->bqd', p.astype(v.dtype), v,
                   preferred_element_type=jnp.float32)
    o_ref[0] = o.astype(o_ref.dtype)


def attention_all_branches(q_stk, k, v_stk, num_heads, *, batch_tile=2):
    """q_stk: (L+1, B*H, T, D); k: (B*H, S, D); v_stk: (L+1, B*H, S, D).
    Returns (avg_weights (L+1, B, T, S), out (L+1, B*H, T, D))."""
    Lp1, BH, T, D = q_stk.shape
    S = k.shape[1]
    H = num_heads
    B = BH // H
    bt = _pick_div(B, batch_tile)                                 # whole batches per step
    scale = math.sqrt(1.0 / float(D))
    kernel = functools.partial(_attention_kernel, scale, H)

    weights, out = pl.pallas_call(
        kernel,
        out_shape=(
            jax.ShapeDtypeStruct((Lp1, B, T, S), q_stk.dtype),    # head-averaged weights
            jax.ShapeDtypeStruct((Lp1, BH, T, D), q_stk.dtype),
        ),
        grid_spec=pltpu.PrefetchScalarGridSpec(
            num_scalar_prefetch=0,
            grid=(Lp1, B // bt),
            in_specs=[
                pl.BlockSpec((1, bt * H, T, D), lambda l, b: (l, b, 0, 0)),
                pl.BlockSpec((bt * H, S, D), lambda l, b: (b, 0, 0)),   # k shared across branches
                pl.BlockSpec((1, bt * H, S, D), lambda l, b: (l, b, 0, 0)),
            ],
            out_specs=[
                pl.BlockSpec((1, bt, T, S), lambda l, b: (l, b, 0, 0)),
                pl.BlockSpec((1, bt * H, T, D), lambda l, b: (l, b, 0, 0)),
            ],
        ),
        compiler_params=pltpu.CompilerParams(
            dimension_semantics=("parallel", "parallel"),
            vmem_limit_bytes=_VMEM_LIMIT,
        ),
    )(q_stk, k, v_stk)
    return weights, out


# ----------------------------------------------------------------------------
# Full LoRAInjectedMultiheadAttention forward (defaults; seq-first layout).
# ----------------------------------------------------------------------------
def lora_mha_forward(query, key, value, params, *, num_heads, num_lora, r,
                     lora_alpha):
    """query: (T, B, E); key/value: (S, B, E). Returns
    (attn_output_all, attn_output_weights_all, feat_loss) with string branch
    keys '0'..'L-1' and 'org' (string keys -> valid, sortable JAX pytree)."""
    T, B, E = query.shape
    S = key.shape[0]
    H = num_heads
    hd = E // H
    Lp1 = num_lora + 1

    # q / v projections are LoRA-injected; k is plain (lora_modules=['q','v']).
    q_stk = lora_injected_linear(query.reshape(T * B, E), params["q_w"],
                                 params["q_b"], params["q_A"], params["q_B"],
                                 lora_alpha=lora_alpha, r=r)       # (L+1, T*B, E)
    v_stk = lora_injected_linear(value.reshape(S * B, E), params["v_w"],
                                 params["v_b"], params["v_A"], params["v_B"],
                                 lora_alpha=lora_alpha, r=r)       # (L+1, S*B, E)
    k_org = linear(key.reshape(S * B, E), params["k_w"], params["k_b"])

    # Layout plumbing mirrors the PyTorch forward:
    #   (T*B, E) -> view (T, B*H, hd) -> transpose(0,1) -> (B*H, T, hd)
    q_bh = q_stk.reshape(Lp1, T, B * H, hd).swapaxes(1, 2)        # (L+1, B*H, T, hd)
    v_bh = v_stk.reshape(Lp1, S, B * H, hd).swapaxes(1, 2)        # (L+1, B*H, S, hd)
    k_bh = k_org.reshape(S, B * H, hd).swapaxes(0, 1)             # (B*H, S, hd)

    w_avg, o = attention_all_branches(q_bh, k_bh, v_bh, H)        # (L+1,B,T,S), (L+1,B*H,T,hd)

    # out_proj for all branches in ONE call: (L+1,B,H,T,hd) -> ((L+1)*T*B, E)
    o = o.reshape(Lp1, B, H, T, hd).transpose(0, 3, 1, 2, 4).reshape(Lp1 * T * B, E)
    o = linear(o, params["out_w"], params["out_b"])
    o = o.reshape(Lp1, T, B, E)

    branch_keys = [str(i) for i in range(num_lora)] + ["org"]
    attn_output_all = {bk: o[i] for i, bk in enumerate(branch_keys)}
    attn_output_weights_all = {bk: w_avg[i] for i, bk in enumerate(branch_keys)}
    feat_loss = []   # feat_loss_fn is None
    return attn_output_all, attn_output_weights_all, feat_loss


# ----------------------------------------------------------------------------
# Pure-JAX reference for verification.
# ----------------------------------------------------------------------------
def _ref_lora_linear(x, w, bias, a_stack, b_stack, scaling):
    out = {}
    result = x @ w.T + bias
    for i in range(a_stack.shape[0]):
        feat = x @ a_stack[i].T
        li = (feat @ b_stack[i].T) * scaling
        out[str(i)] = li
        result = result + li
    out["org"] = result
    return out


def _ref_mha(query, key, value, params, *, num_heads, num_lora, r, lora_alpha):
    T, B, E = query.shape
    S = key.shape[0]
    H = num_heads
    hd = E // H
    scaling = lora_alpha / r
    q_all = _ref_lora_linear(query.reshape(T * B, E), params["q_w"],
                             params["q_b"], params["q_A"], params["q_B"], scaling)
    v_all = _ref_lora_linear(value.reshape(S * B, E), params["v_w"],
                             params["v_b"], params["v_A"], params["v_B"], scaling)
    k_org = key.reshape(S * B, E) @ params["k_w"].T + params["k_b"]
    outs, wts = {}, {}
    for bk in [str(i) for i in range(num_lora)] + ["org"]:
        q = q_all[bk].reshape(T, B * H, hd).swapaxes(0, 1)
        k = k_org.reshape(S, B * H, hd).swapaxes(0, 1)
        v = v_all[bk].reshape(S, B * H, hd).swapaxes(0, 1)
        scores = (q * math.sqrt(1.0 / float(hd))) @ k.swapaxes(-1, -2)
        w = jax.nn.softmax(scores, axis=-1)
        o = w @ v
        o = o.swapaxes(0, 1).reshape(T * B, E)
        o = o @ params["out_w"].T + params["out_b"]
        outs[bk] = o.reshape(T, B, E)
        wts[bk] = w.reshape(B, H, T, S).mean(axis=1)
    return outs, wts


if __name__ == "__main__":
    # Small shapes: seq=8, batch=2, embed_dim=32, heads=4 (head_dim=8).
    T, S, B = 8, 8, 2
    E, H = 32, 4
    num_lora, r, lora_alpha = 2, 8, 16
    f32 = jnp.float32

    master = jax.random.PRNGKey(0)
    keys = jax.random.split(master, 16)

    query = jax.random.normal(keys[0], (T, B, E), dtype=f32)
    key_in = jax.random.normal(keys[1], (S, B, E), dtype=f32)
    value_in = jax.random.normal(keys[2], (S, B, E), dtype=f32)

    def mk_lin(kw, kb, n, kdim):
        return (jax.random.normal(kw, (n, kdim), f32) * 0.05,
                jax.random.normal(kb, (n,), f32) * 0.01)

    params = {}
    params["q_w"], params["q_b"] = mk_lin(keys[3], keys[4], E, E)
    params["k_w"], params["k_b"] = mk_lin(keys[5], keys[6], E, E)
    params["v_w"], params["v_b"] = mk_lin(keys[7], keys[8], E, E)
    params["out_w"], params["out_b"] = mk_lin(keys[9], keys[10], E, E)
    # NOTE: module init zeros lora{i}_B (LoRA output exactly 0); small random
    # values are used here so the LoRA branches are numerically non-trivial.
    params["q_A"] = jax.random.uniform(keys[11], (num_lora, r, E), f32, -0.2, 0.2)
    params["q_B"] = jax.random.normal(keys[12], (num_lora, E, r), f32) * 0.02
    params["v_A"] = jax.random.uniform(keys[13], (num_lora, r, E), f32, -0.2, 0.2)
    params["v_B"] = jax.random.normal(keys[14], (num_lora, E, r), f32) * 0.02

    fwd = jax.jit(functools.partial(lora_mha_forward, num_heads=H,
                                    num_lora=num_lora, r=r, lora_alpha=lora_alpha))
    attn_out, attn_w, feat_loss = fwd(query, key_in, value_in, params)
    jax.block_until_ready((attn_out, attn_w))

    ref_out, ref_w = _ref_mha(query, key_in, value_in, params, num_heads=H,
                              num_lora=num_lora, r=r, lora_alpha=lora_alpha)
    ok = True
    for bk in attn_out:
        ok = ok and bool(jnp.allclose(attn_out[bk], ref_out[bk], atol=1e-4, rtol=1e-4))
        ok = ok and bool(jnp.allclose(attn_w[bk], ref_w[bk], atol=1e-4, rtol=1e-4))
    assert ok, "mismatch vs reference"
    assert feat_loss == []

    print("KERNEL_OK")
</pallas_src>

<mosaic_0001>
module attributes {stable_mosaic.version = 11 : i64} {
  func.func @_lora_linear_kernel(%arg0: i32, %arg1: memref<16x32xf32, #tpu.memory_space<vmem>>, %arg2: memref<32x32xf32, #tpu.memory_space<vmem>>, %arg3: memref<1x32xf32, #tpu.memory_space<vmem>>, %arg4: memref<16x32xf32, #tpu.memory_space<vmem>>, %arg5: memref<2x32x8xf32, #tpu.memory_space<vmem>>, %arg6: memref<3x16x32xf32, #tpu.memory_space<vmem>>) attributes {dimension_semantics = [#tpu.dimension_semantics<parallel>], iteration_bounds = array<i64: 1>, scalar_prefetch = 0 : i64, scratch_operands = 0 : i64, tpu.core_type = #tpu.core_type<tc>, window_params = [{transform_indices = @transform_0, window_bounds = array<i64: 16, 32>}, {pipeline_mode = #tpu.pipeline_mode<synchronous>, transform_indices = @transform_1, window_bounds = array<i64: 32, 32>}, {pipeline_mode = #tpu.pipeline_mode<synchronous>, transform_indices = @transform_2, window_bounds = array<i64: 1, 32>}, {pipeline_mode = #tpu.pipeline_mode<synchronous>, transform_indices = @transform_3, window_bounds = array<i64: 16, 32>}, {pipeline_mode = #tpu.pipeline_mode<synchronous>, transform_indices = @transform_4, window_bounds = array<i64: 2, 32, 8>}, {transform_indices = @transform_5, window_bounds = array<i64: 3, 16, 32>}]} {
    %c0 = arith.constant 0 : index
    %c0_0 = arith.constant 0 : index
    %0 = vector.load %arg1[%c0, %c0_0] : memref<16x32xf32, #tpu.memory_space<vmem>>, vector<16x32xf32>
    %c0_1 = arith.constant 0 : index
    %c0_2 = arith.constant 0 : index
    %1 = vector.load %arg2[%c0_1, %c0_2] : memref<32x32xf32, #tpu.memory_space<vmem>>, vector<32x32xf32>
    %cst = arith.constant dense<0.000000e+00> : vector<16x32xf32>
    %2 = tpu.matmul %0, %1, %cst {dimension_numbers = #tpu.dot_dimension_numbers<[1], [1], [0], [0], [0, 0, 1, 0], [], []>} : vector<16x32xf32>, vector<32x32xf32>, vector<16x32xf32> -> vector<16x32xf32>
    %c0_3 = arith.constant 0 : index
    %c0_4 = arith.constant 0 : index
    %3 = vector.load %arg3[%c0_3, %c0_4] : memref<1x32xf32, #tpu.memory_space<vmem>>, vector<1x32xf32>
    %4 = vector.broadcast %3 : vector<1x32xf32> to vector<16x32xf32>
    %5 = arith.addf %2, %4 : vector<16x32xf32>
    %c0_5 = arith.constant 0 : index
    %c0_6 = arith.constant 0 : index
    %6 = vector.load %arg4[%c0_5, %c0_6] : memref<16x32xf32, #tpu.memory_space<vmem>>, vector<16x32xf32>
    %cst_7 = arith.constant dense<0.000000e+00> : vector<16x16xf32>
    %7 = tpu.matmul %0, %6, %cst_7 {dimension_numbers = #tpu.dot_dimension_numbers<[1], [1], [0], [0], [0, 0, 1, 0], [], []>} : vector<16x32xf32>, vector<16x32xf32>, vector<16x16xf32> -> vector<16x16xf32>
    %8 = vector.extract_strided_slice %7 {offsets = [0, 0], sizes = [16, 8], strides = [1, 1]} : vector<16x16xf32> to vector<16x8xf32>
    %c0_8 = arith.constant 0 : index
    %c0_9 = arith.constant 0 : index
    %c0_10 = arith.constant 0 : index
    %9 = vector.load %arg5[%c0_8, %c0_9, %c0_10] : memref<2x32x8xf32, #tpu.memory_space<vmem>>, vector<1x32x8xf32>
    %10 = vector.shape_cast %9 : vector<1x32x8xf32> to vector<32x8xf32>
    %cst_11 = arith.constant dense<0.000000e+00> : vector<16x32xf32>
    %11 = tpu.matmul %8, %10, %cst_11 {dimension_numbers = #tpu.dot_dimension_numbers<[1], [1], [0], [0], [0, 0, 1, 0], [], []>} : vector<16x8xf32>, vector<32x8xf32>, vector<16x32xf32> -> vector<16x32xf32>
    %cst_12 = arith.constant 2.000000e+00 : f32
    %12 = vector.broadcast %cst_12 : f32 to vector<16x32xf32>
    %13 = arith.mulf %11, %12 : vector<16x32xf32>
    %c0_13 = arith.constant 0 : index
    %c0_14 = arith.constant 0 : index
    %c0_15 = arith.constant 0 : index
    %14 = vector.load %arg6[%c0_13, %c0_14, %c0_15] : memref<3x16x32xf32, #tpu.memory_space<vmem>>, vector<1x16x32xf32>
    %15 = vector.shape_cast %14 : vector<1x16x32xf32> to vector<16x32xf32>
    %16 = vector.shape_cast %13 : vector<16x32xf32> to vector<1x16x32xf32>
    tpu.vector_store %arg6[%c0_13, %c0_14, %c0_15], %16 {strides = array<i32>} : memref<3x16x32xf32, #tpu.memory_space<vmem>>, vector<1x16x32xf32>,
    %17 = arith.addf %5, %13 : vector<16x32xf32>
    %18 = vector.extract_strided_slice %7 {offsets = [0, 8], sizes = [16, 8], strides = [1, 1]} : vector<16x16xf32> to vector<16x8xf32>
    %c1 = arith.constant 1 : index
    %c0_16 = arith.constant 0 : index
    %c0_17 = arith.constant 0 : index
    %19 = vector.load %arg5[%c1, %c0_16, %c0_17] : memref<2x32x8xf32, #tpu.memory_space<vmem>>, vector<1x32x8xf32>
    %20 = vector.shape_cast %19 : vector<1x32x8xf32> to vector<32x8xf32>
    %cst_18 = arith.constant dense<0.000000e+00> : vector<16x32xf32>
    %21 = tpu.matmul %18, %20, %cst_18 {dimension_numbers = #tpu.dot_dimension_numbers<[1], [1], [0], [0], [0, 0, 1, 0], [], []>} : vector<16x8xf32>, vector<32x8xf32>, vector<16x32xf32> -> vector<16x32xf32>
    %cst_19 = arith.constant 2.000000e+00 : f32
    %22 = vector.broadcast %cst_19 : f32 to vector<16x32xf32>
    %23 = arith.mulf %21, %22 : vector<16x32xf32>
    %c1_20 = arith.constant 1 : index
    %c0_21 = arith.constant 0 : index
    %c0_22 = arith.constant 0 : index
    %24 = vector.load %arg6[%c1_20, %c0_21, %c0_22] : memref<3x16x32xf32, #tpu.memory_space<vmem>>, vector<1x16x32xf32>
    %25 = vector.shape_cast %24 : vector<1x16x32xf32> to vector<16x32xf32>
    %26 = vector.shape_cast %23 : vector<16x32xf32> to vector<1x16x32xf32>
    tpu.vector_store %arg6[%c1_20, %c0_21, %c0_22], %26 {strides = array<i32>} : memref<3x16x32xf32, #tpu.memory_space<vmem>>, vector<1x16x32xf32>,
    %27 = arith.addf %17, %23 : vector<16x32xf32>
    %c2 = arith.constant 2 : index
    %c0_23 = arith.constant 0 : index
    %c0_24 = arith.constant 0 : index
    %28 = vector.load %arg6[%c2, %c0_23, %c0_24] : memref<3x16x32xf32, #tpu.memory_space<vmem>>, vector<1x16x32xf32>
    %29 = vector.shape_cast %28 : vector<1x16x32xf32> to vector<16x32xf32>
    %30 = vector.shape_cast %27 : vector<16x32xf32> to vector<1x16x32xf32>
    tpu.vector_store %arg6[%c2, %c0_23, %c0_24], %30 {strides = array<i32>} : memref<3x16x32xf32, #tpu.memory_space<vmem>>, vector<1x16x32xf32>,
    return
  }
  func.func @transform_0(%arg0: i32) -> (i32, i32) {
    %c0_i32 = arith.constant 0 : i32
    %c0_i32_0 = arith.constant 0 : i32
    return %arg0, %c0_i32 : i32, i32
  }
  func.func @transform_1(%arg0: i32) -> (i32, i32) {
    %c0_i32 = arith.constant 0 : i32
    %c0_i32_0 = arith.constant 0 : i32
    %c0_i32_1 = arith.constant 0 : i32
    return %c0_i32, %c0_i32_0 : i32, i32
  }
  func.func @transform_2(%arg0: i32) -> (i32, i32) {
    %c0_i32 = arith.constant 0 : i32
    %c0_i32_0 = arith.constant 0 : i32
    %c0_i32_1 = arith.constant 0 : i32
    return %c0_i32, %c0_i32_0 : i32, i32
  }
  func.func @transform_3(%arg0: i32) -> (i32, i32) {
    %c0_i32 = arith.constant 0 : i32
    %c0_i32_0 = arith.constant 0 : i32
    %c0_i32_1 = arith.constant 0 : i32
    return %c0_i32, %c0_i32_0 : i32, i32
  }
  func.func @transform_4(%arg0: i32) -> (i32, i32, i32) {
    %c0_i32 = arith.constant 0 : i32
    %c0_i32_0 = arith.constant 0 : i32
    %c0_i32_1 = arith.constant 0 : i32
    %c0_i32_2 = arith.constant 0 : i32
    return %c0_i32, %c0_i32_0, %c0_i32_1 : i32, i32, i32
  }
  func.func @transform_5(%arg0: i32) -> (i32, i32, i32) {
    %c0_i32 = arith.constant 0 : i32
    %c0_i32_0 = arith.constant 0 : i32
    %c0_i32_1 = arith.constant 0 : i32
    return %c0_i32, %arg0, %c0_i32_0 : i32, i32, i32
  }
}

module attributes {stable_mosaic.version = 11 : i64} {
  func.func @_linear_kernel(%arg0: i32, %arg1: memref<16x32xf32, #tpu.memory_space<vmem>>, %arg2: memref<32x32xf32, #tpu.memory_space<vmem>>, %arg3: memref<1x32xf32, #tpu.memory_space<vmem>>, %arg4: memref<16x32xf32, #tpu.memory_space<vmem>>) attributes {dimension_semantics = [#tpu.dimension_semantics<parallel>], iteration_bounds = array<i64: 1>, scalar_prefetch = 0 : i64, scratch_operands = 0 : i64, tpu.core_type = #tpu.core_type<tc>, window_params = [{transform_indices = @transform_0, window_bounds = array<i64: 16, 32>}, {pipeline_mode = #tpu.pipeline_mode<synchronous>, transform_indices = @transform_1, window_bounds = array<i64: 32, 32>}, {pipeline_mode = #tpu.pipeline_mode<synchronous>, transform_indices = @transform_2, window_bounds = array<i64: 1, 32>}, {transform_indices = @transform_3, window_bounds = array<i64: 16, 32>}]} {
    %c0 = arith.constant 0 : index
    %c0_0 = arith.constant 0 : index
    %0 = vector.load %arg1[%c0, %c0_0] : memref<16x32xf32, #tpu.memory_space<vmem>>, vector<16x32xf32>
    %c0_1 = arith.constant 0 : index
    %c0_2 = arith.constant 0 : index
    %1 = vector.load %arg2[%c0_1, %c0_2] : memref<32x32xf32, #tpu.memory_space<vmem>>, vector<32x32xf32>
    %cst = arith.constant dense<0.000000e+00> : vector<16x32xf32>
    %2 = tpu.matmul %0, %1, %cst {dimension_numbers = #tpu.dot_dimension_numbers<[1], [1], [0], [0], [0, 0, 1, 0], [], []>} : vector<16x32xf32>, vector<32x32xf32>, vector<16x32xf32> -> vector<16x32xf32>
    %c0_3 = arith.constant 0 : index
    %c0_4 = arith.constant 0 : index
    %3 = vector.load %arg3[%c0_3, %c0_4] : memref<1x32xf32, #tpu.memory_space<vmem>>, vector<1x32xf32>
    %4 = vector.broadcast %3 : vector<1x32xf32> to vector<16x32xf32>
    %5 = arith.addf %2, %4 : vector<16x32xf32>
    %c0_5 = arith.constant 0 : index
    %c0_6 = arith.constant 0 : index
    %6 = vector.load %arg4[%c0_5, %c0_6] : memref<16x32xf32, #tpu.memory_space<vmem>>, vector<16x32xf32>
    tpu.vector_store %arg4[%c0_5, %c0_6], %5 {strides = array<i32>} : memref<16x32xf32, #tpu.memory_space<vmem>>, vector<16x32xf32>,
    return
  }
  func.func @transform_0(%arg0: i32) -> (i32, i32) {
    %c0_i32 = arith.constant 0 : i32
    %c0_i32_0 = arith.constant 0 : i32
    return %arg0, %c0_i32 : i32, i32
  }
  func.func @transform_1(%arg0: i32) -> (i32, i32) {
    %c0_i32 = arith.constant 0 : i32
    %c0_i32_0 = arith.constant 0 : i32
    %c0_i32_1 = arith.constant 0 : i32
    return %c0_i32, %c0_i32_0 : i32, i32
  }
  func.func @transform_2(%arg0: i32) -> (i32, i32) {
    %c0_i32 = arith.constant 0 : i32
    %c0_i32_0 = arith.constant 0 : i32
    %c0_i32_1 = arith.constant 0 : i32
    return %c0_i32, %c0_i32_0 : i32, i32
  }
  func.func @transform_3(%arg0: i32) -> (i32, i32) {
    %c0_i32 = arith.constant 0 : i32
    %c0_i32_0 = arith.constant 0 : i32
    return %arg0, %c0_i32 : i32, i32
  }
}

module attributes {stable_mosaic.version = 11 : i64} {
  func.func @_attention_kernel(%arg0: i32, %arg1: i32, %arg2: memref<1x8x8x8xf32, #tpu.memory_space<vmem>>, %arg3: memref<8x8x8xf32, #tpu.memory_space<vmem>>, %arg4: memref<1x8x8x8xf32, #tpu.memory_space<vmem>>, %arg5: memref<1x2x8x8xf32, #tpu.memory_space<vmem>>, %arg6: memref<1x8x8x8xf32, #tpu.memory_space<vmem>>) attributes {dimension_semantics = [#tpu.dimension_semantics<parallel>, #tpu.dimension_semantics<parallel>], iteration_bounds = array<i64: 3, 1>, scalar_prefetch = 0 : i64, scratch_operands = 0 : i64, tpu.core_type = #tpu.core_type<tc>, window_params = [{transform_indices = @transform_0, window_bounds = array<i64: 1, 8, 8, 8>}, {transform_indices = @transform_1, window_bounds = array<i64: 8, 8, 8>}, {transform_indices = @transform_2, window_bounds = array<i64: 1, 8, 8, 8>}, {transform_indices = @transform_3, window_bounds = array<i64: 1, 2, 8, 8>}, {transform_indices = @transform_4, window_bounds = array<i64: 1, 8, 8, 8>}]} {
    %c0 = arith.constant 0 : index
    %c0_0 = arith.constant 0 : index
    %c0_1 = arith.constant 0 : index
    %c0_2 = arith.constant 0 : index
    %0 = vector.load %arg2[%c0, %c0_0, %c0_1, %c0_2] : memref<1x8x8x8xf32, #tpu.memory_space<vmem>>, vector<1x8x8x8xf32>
    %1 = vector.shape_cast %0 : vector<1x8x8x8xf32> to vector<8x8x8xf32>
    %cst = arith.constant 0.353553385 : f32
    %2 = vector.broadcast %cst : f32 to vector<8x8x8xf32>
    %3 = arith.mulf %1, %2 : vector<8x8x8xf32>
    %c0_3 = arith.constant 0 : index
    %c0_4 = arith.constant 0 : index
    %c0_5 = arith.constant 0 : index
    %4 = vector.load %arg3[%c0_3, %c0_4, %c0_5] : memref<8x8x8xf32, #tpu.memory_space<vmem>>, vector<8x8x8xf32>
    "tpu.trace_start"() <{level = 10 : i32, message = "bqd,bkd->bqk"}> : () -> ()
    %cst_6 = arith.constant dense<0.000000e+00> : vector<8x8x8xf32>
    %5 = tpu.matmul %3, %4, %cst_6 {dimension_numbers = #tpu.dot_dimension_numbers<[2], [2], [1], [1], [0, 0, 0, 1, 1, 1], [0], [0]>} : vector<8x8x8xf32>, vector<8x8x8xf32>, vector<8x8x8xf32> -> vector<8x8x8xf32>
    "tpu.trace_stop"() : () -> ()
    %cst_7 = arith.constant dense<0xFF800000> : vector<8x8xf32>
    %6 = vector.multi_reduction <maximumf>, %5, %cst_7 [2] : vector<8x8x8xf32> to vector<8x8xf32>
    %7 = vector.shape_cast %6 : vector<8x8xf32> to vector<8x8x1xf32>
    %8 = vector.broadcast %7 : vector<8x8x1xf32> to vector<8x8x8xf32>
    %9 = arith.subf %5, %8 : vector<8x8x8xf32>
    %10 = math.exp %9 : vector<8x8x8xf32>
    %cst_8 = arith.constant dense<0.000000e+00> : vector<8x8xf32>
    %11 = vector.multi_reduction <add>, %10, %cst_8 [2] : vector<8x8x8xf32> to vector<8x8xf32>
    %12 = vector.shape_cast %11 : vector<8x8xf32> to vector<8x8x1xf32>
    %13 = vector.broadcast %12 : vector<8x8x1xf32> to vector<8x8x8xf32>
    %14 = arith.divf %10, %13 : vector<8x8x8xf32>
    %15 = vector.shape_cast %14 : vector<8x8x8xf32> to vector<2x4x8x8xf32>
    %cst_9 = arith.constant dense<0.000000e+00> : vector<2x8x8xf32>
    %16 = vector.multi_reduction <add>, %15, %cst_9 [1] : vector<2x4x8x8xf32> to vector<2x8x8xf32>
    %cst_10 = arith.constant 4.000000e+00 : f32
    %17 = vector.broadcast %cst_10 : f32 to vector<2x8x8xf32>
    %18 = arith.divf %16, %17 : vector<2x8x8xf32>
    %c0_11 = arith.constant 0 : index
    %c0_12 = arith.constant 0 : index
    %c0_13 = arith.constant 0 : index
    %c0_14 = arith.constant 0 : index
    %19 = vector.load %arg5[%c0_11, %c0_12, %c0_13, %c0_14] : memref<1x2x8x8xf32, #tpu.memory_space<vmem>>, vector<1x2x8x8xf32>
    %20 = vector.shape_cast %19 : vector<1x2x8x8xf32> to vector<2x8x8xf32>
    %21 = vector.shape_cast %18 : vector<2x8x8xf32> to vector<1x2x8x8xf32>
    tpu.vector_store %arg5[%c0_11, %c0_12, %c0_13, %c0_14], %21 {strides = array<i32>} : memref<1x2x8x8xf32, #tpu.memory_space<vmem>>, vector<1x2x8x8xf32>,
    %c0_15 = arith.constant 0 : index
    %c0_16 = arith.constant 0 : index
    %c0_17 = arith.constant 0 : index
    %c0_18 = arith.constant 0 : index
    %22 = vector.load %arg4[%c0_15, %c0_16, %c0_17, %c0_18] : memref<1x8x8x8xf32, #tpu.memory_space<vmem>>, vector<1x8x8x8xf32>
    %23 = vector.shape_cast %22 : vector<1x8x8x8xf32> to vector<8x8x8xf32>
    "tpu.trace_start"() <{level = 10 : i32, message = "bqk,bkd->bqd"}> : () -> ()
    %cst_19 = arith.constant dense<0.000000e+00> : vector<8x8x8xf32>
    %24 = tpu.matmul %14, %23, %cst_19 {dimension_numbers = #tpu.dot_dimension_numbers<[2], [1], [1], [2], [0, 0, 0, 1, 1, 2], [0], [0]>} : vector<8x8x8xf32>, vector<8x8x8xf32>, vector<8x8x8xf32> -> vector<8x8x8xf32>
    "tpu.trace_stop"() : () -> ()
    %c0_20 = arith.constant 0 : index
    %c0_21 = arith.constant 0 : index
    %c0_22 = arith.constant 0 : index
    %c0_23 = arith.constant 0 : index
    %25 = vector.load %arg6[%c0_20, %c0_21, %c0_22, %c0_23] : memref<1x8x8x8xf32, #tpu.memory_space<vmem>>, vector<1x8x8x8xf32>
    %26 = vector.shape_cast %25 : vector<1x8x8x8xf32> to vector<8x8x8xf32>
    %27 = vector.shape_cast %24 : vector<8x8x8xf32> to vector<1x8x8x8xf32>
    tpu.vector_store %arg6[%c0_20, %c0_21, %c0_22, %c0_23], %27 {strides = array<i32>} : memref<1x8x8x8xf32, #tpu.memory_space<vmem>>, vector<1x8x8x8xf32>,
    return
  }
  func.func @transform_0(%arg0: i32, %arg1: i32) -> (i32, i32, i32, i32) {
    %c0_i32 = arith.constant 0 : i32
    %c0_i32_0 = arith.constant 0 : i32
    %c0_i32_1 = arith.constant 0 : i32
    return %arg0, %arg1, %c0_i32, %c0_i32_0 : i32, i32, i32, i32
  }
  func.func @transform_1(%arg0: i32, %arg1: i32) -> (i32, i32, i32) {
    %c0_i32 = arith.constant 0 : i32
    %c0_i32_0 = arith.constant 0 : i32
    %c0_i32_1 = arith.constant 0 : i32
    return %arg1, %c0_i32, %c0_i32_0 : i32, i32, i32
  }
  func.func @transform_2(%arg0: i32, %arg1: i32) -> (i32, i32, i32, i32) {
    %c0_i32 = arith.constant 0 : i32
    %c0_i32_0 = arith.constant 0 : i32
    %c0_i32_1 = arith.constant 0 : i32
    return %arg0, %arg1, %c0_i32, %c0_i32_0 : i32, i32, i32, i32
  }
  func.func @transform_3(%arg0: i32, %arg1: i32) -> (i32, i32, i32, i32) {
    %c0_i32 = arith.constant 0 : i32
    %c0_i32_0 = arith.constant 0 : i32
    %c0_i32_1 = arith.constant 0 : i32
    return %arg0, %arg1, %c0_i32, %c0_i32_0 : i32, i32, i32, i32
  }
  func.func @transform_4(%arg0: i32, %arg1: i32) -> (i32, i32, i32, i32) {
    %c0_i32 = arith.constant 0 : i32
    %c0_i32_0 = arith.constant 0 : i32
    %c0_i32_1 = arith.constant 0 : i32
    return %arg0, %arg1, %c0_i32, %c0_i32_0 : i32, i32, i32, i32
  }
}

module attributes {stable_mosaic.version = 11 : i64} {
  func.func @_linear_kernel(%arg0: i32, %arg1: memref<48x32xf32, #tpu.memory_space<vmem>>, %arg2: memref<32x32xf32, #tpu.memory_space<vmem>>, %arg3: memref<1x32xf32, #tpu.memory_space<vmem>>, %arg4: memref<48x32xf32, #tpu.memory_space<vmem>>) attributes {dimension_semantics = [#tpu.dimension_semantics<parallel>], iteration_bounds = array<i64: 1>, scalar_prefetch = 0 : i64, scratch_operands = 0 : i64, tpu.core_type = #tpu.core_type<tc>, window_params = [{transform_indices = @transform_0, window_bounds = array<i64: 48, 32>}, {pipeline_mode = #tpu.pipeline_mode<synchronous>, transform_indices = @transform_1, window_bounds = array<i64: 32, 32>}, {pipeline_mode = #tpu.pipeline_mode<synchronous>, transform_indices = @transform_2, window_bounds = array<i64: 1, 32>}, {transform_indices = @transform_3, window_bounds = array<i64: 48, 32>}]} {
    %c0 = arith.constant 0 : index
    %c0_0 = arith.constant 0 : index
    %0 = vector.load %arg1[%c0, %c0_0] : memref<48x32xf32, #tpu.memory_space<vmem>>, vector<48x32xf32>
    %c0_1 = arith.constant 0 : index
    %c0_2 = arith.constant 0 : index
    %1 = vector.load %arg2[%c0_1, %c0_2] : memref<32x32xf32, #tpu.memory_space<vmem>>, vector<32x32xf32>
    %cst = arith.constant dense<0.000000e+00> : vector<48x32xf32>
    %2 = tpu.matmul %0, %1, %cst {dimension_numbers = #tpu.dot_dimension_numbers<[1], [1], [0], [0], [0, 0, 1, 0], [], []>} : vector<48x32xf32>, vector<32x32xf32>, vector<48x32xf32> -> vector<48x32xf32>
    %c0_3 = arith.constant 0 : index
    %c0_4 = arith.constant 0 : index
    %3 = vector.load %arg3[%c0_3, %c0_4] : memref<1x32xf32, #tpu.memory_space<vmem>>, vector<1x32xf32>
    %4 = vector.broadcast %3 : vector<1x32xf32> to vector<48x32xf32>
    %5 = arith.addf %2, %4 : vector<48x32xf32>
    %c0_5 = arith.constant 0 : index
    %c0_6 = arith.constant 0 : index
    %6 = vector.load %arg4[%c0_5, %c0_6] : memref<48x32xf32, #tpu.memory_space<vmem>>, vector<48x32xf32>
    tpu.vector_store %arg4[%c0_5, %c0_6], %5 {strides = array<i32>} : memref<48x32xf32, #tpu.memory_space<vmem>>, vector<48x32xf32>,
    return
  }
  func.func @transform_0(%arg0: i32) -> (i32, i32) {
    %c0_i32 = arith.constant 0 : i32
    %c0_i32_0 = arith.constant 0 : i32
    return %arg0, %c0_i32 : i32, i32
  }
  func.func @transform_1(%arg0: i32) -> (i32, i32) {
    %c0_i32 = arith.constant 0 : i32
    %c0_i32_0 = arith.constant 0 : i32
    %c0_i32_1 = arith.constant 0 : i32
    return %c0_i32, %c0_i32_0 : i32, i32
  }
  func.func @transform_2(%arg0: i32) -> (i32, i32) {
    %c0_i32 = arith.constant 0 : i32
    %c0_i32_0 = arith.constant 0 : i32
    %c0_i32_1 = arith.constant 0 : i32
    return %c0_i32, %c0_i32_0 : i32, i32
  }
  func.func @transform_3(%arg0: i32) -> (i32, i32) {
    %c0_i32 = arith.constant 0 : i32
    %c0_i32_0 = arith.constant 0 : i32
    return %arg0, %c0_i32 : i32, i32
  }
}

</mosaic_0001>

<llo_original>
// kernel: lora_mha_forward.5
$region0: #{lora_mha_forward.5}
  #allocation0 [shape = 'u32[]', space=smem, size = 0x4, offset = 0x4, fixed_abs, tag = 'smem constant byte address 0x4 - core index']
  #allocation1 [shape = 'u32[72,128]{1,0:T(1,128)}', space=vmem, size = 0x9000, scoped, tag = 'internal scratch']
  %s0 = inlined_call_operand.vmem [shape: f32[16,32], index: 0, kind: input, shape index: {}]
  %s1 = inlined_call_operand.vmem [shape: f32[32,32], index: 1, kind: input, shape index: {}]
  %s2 = inlined_call_operand.vmem [shape: f32[1,32], index: 2, kind: input, shape index: {}]
  %s3 = inlined_call_operand.vmem [shape: f32[16,32], index: 3, kind: input, shape index: {}]
  %s4 = inlined_call_operand.vmem [shape: f32[2,32,8], index: 4, kind: input, shape index: {}]
  %s5 = inlined_call_operand.vmem [shape: f32[3,16,32], index: 5, kind: output, shape index: {}]
  %s6 = sld [smem:[#allocation0]]
  $region30: #{lora_mha_forward.5} parent=0
    _
  %s8 = ssub.s32 1, %s6
  %s9 = scalar_select 0, %s8, %s6
  // Predicated region
  $region2: #{lora_mha_forward.5} parent=0 // pred_check
    _
  $region3: #{lora_mha_forward.5} parent=0 // pred_check_branch
    %11 = sbr.rel (0) target = $region5
  $region4: #{lora_mha_forward.5} parent=0 // pred_region
    _
  $region5: #{lora_mha_forward.5} parent=0 // pred_fallthru
    _
  // Predicated region
  $region6: #{lora_mha_forward.5} parent=0 // pred_check
    _
  $region7: #{lora_mha_forward.5} parent=0 // pred_check_branch
    %13 = sbr.rel (0) target = $region9
  $region8: #{lora_mha_forward.5} parent=0 // pred_region
    _
  $region9: #{lora_mha_forward.5} parent=0 // pred_fallthru
    _
  // Predicated region
  $region10: #{lora_mha_forward.5} parent=0 // pred_check
    _
  $region11: #{lora_mha_forward.5} parent=0 // pred_check_branch
    %15 = sbr.rel (0) target = $region13
  $region12: #{lora_mha_forward.5} parent=0 // pred_region
    _
  $region13: #{lora_mha_forward.5} parent=0 // pred_fallthru
    _
  // Predicated region
  $region14: #{lora_mha_forward.5} parent=0 // pred_check
    _
  $region15: #{lora_mha_forward.5} parent=0 // pred_check_branch
    %17 = sbr.rel (0) target = $region17
  $region16: #{lora_mha_forward.5} parent=0 // pred_region
    _
  $region17: #{lora_mha_forward.5} parent=0 // pred_fallthru
    _
  // Predicated region
  $region18: #{lora_mha_forward.5} parent=0 // pred_check
    _
  $region19: #{lora_mha_forward.5} parent=0 // pred_check_branch
    %19 = sbr.rel (0) target = $region21
  $region20: #{lora_mha_forward.5} parent=0 // pred_region
    _
  $region21: #{lora_mha_forward.5} parent=0 // pred_fallthru
    _
  %v20 = vld [vmem:[%s0] sm:$0xff]
  %v21 = vld [vmem:[%s0 + $0x8] sm:$0xff]
  %v22 = vld [vmem:[%s1] sm:$0xff]
  %v23 = vld [vmem:[%s1 + $0x8] sm:$0xff]
  %v24 = vld [vmem:[%s1 + $0x10] sm:$0xff]
  %v25 = vld [vmem:[%s1 + $0x18] sm:$0xff]
  %v26 = vld [vmem:[%s2] sm:$0x1]
  %v28 = vperm.slane %v26, 0
  %vm30 = vcmask 261120
  %v32 = vsel %vm30, %v20, 0
  %v35 = vsel %vm30, %v21, 0
  %v38 = vsel %vm30, %v22, 0
  %v41 = vsel %vm30, %v23, 0
  %v44 = vsel %vm30, %v24, 0
  %v47 = vsel %vm30, %v25, 0
  %49 = vmatpush.xpose.msra.mxu0 0.0
  %50 = vmatpush.xpose.msra.mxu0 0.0
  %51 = vmatpush.xpose.msra.mxu0 0.0
  %52 = vmatpush.xpose.msra.mxu0 0.0
  %53 = vmatpush.xpose.msra.mxu0 0.0
  %54 = vmatpush.xpose.msra.mxu0 0.0
  %55 = vmatpush.xpose.msra.mxu0 0.0
  %56 = vmatpush.xpose.msra.mxu0 0.0
  %57 = vmatpush.xpose.msra.mxu0 0.0
  %58 = vmatpush.xpose.msra.mxu0 0.0
  %59 = vmatpush.xpose.msra.mxu0 0.0
  %60 = vmatpush.xpose.msra.mxu0 0.0
  %61 = vmatpush.xpose.msra.mxu0 %v47
  %62 = vmatpush.xpose.msra.mxu0 %v44
  %63 = vmatpush.xpose.msra.mxu0 %v41
  %64 = vmatpush.xpose.msra.mxu0 %v38
  %65 = vmatmul.f32.gmra.mxu0 %v32
  %v66 = vpop.f32.mrf.mxu0
  %v67 = vadd.f32 %v28, %v66
  %68 = vmatmul.f32.gmra.mxu0 %v35
  %v69 = vpop.f32.mrf.mxu0
  %v70 = vadd.f32 %v28, %v69
  %71 = vdwg.mxu0
  %v72 = vld [vmem:[%s3] sm:$0xff]
  %v73 = vld [vmem:[%s3 + $0x8] sm:$0xff]
  %v75 = vsel %vm30, %v72, 0
  %v78 = vsel %vm30, %v73, 0
  %80 = vmatpush.xpose.msra.mxu0 0.0
  %81 = vmatpush.xpose.msra.mxu0 0.0
  %82 = vmatpush.xpose.msra.mxu0 0.0
  %83 = vmatpush.xpose.msra.mxu0 0.0
  %84 = vmatpush.xpose.msra.mxu0 0.0
  %85 = vmatpush.xpose.msra.mxu0 0.0
  %86 = vmatpush.xpose.msra.mxu0 0.0
  %87 = vmatpush.xpose.msra.mxu0 0.0
  %88 = vmatpush.xpose.msra.mxu0 0.0
  %89 = vmatpush.xpose.msra.mxu0 0.0
  %90 = vmatpush.xpose.msra.mxu0 0.0
  %91 = vmatpush.xpose.msra.mxu0 0.0
  %92 = vmatpush.xpose.msra.mxu0 0.0
  %93 = vmatpush.xpose.msra.mxu0 0.0
  %94 = vmatpush.xpose.msra.mxu0 %v78
  %95 = vmatpush.xpose.msra.mxu0 %v75
  %96 = vmatmul.f32.gmra.mxu0 %v32
  %v97 = vpop.f32.mrf.mxu0
  %v98 = vadd.f32 0.0, %v97
  %99 = vmatmul.f32.gmra.mxu0 %v35
  %v100 = vpop.f32.mrf.mxu0
  %v101 = vadd.f32 0.0, %v100
  %102 = vdwg.mxu0
  %v103 = vld [vmem:[%s4] sm:$0xff]
  %v104 = vld [vmem:[%s4 + $0x8] sm:$0xff]
  %v105 = vld [vmem:[%s4 + $0x10] sm:$0xff]
  %v106 = vld [vmem:[%s4 + $0x18] sm:$0xff]
  %vm107 = vcmask 64512
  %v109 = vsel %vm107, %v98, 0
  %v112 = vsel %vm107, %v101, 0
  %v115 = vsel %vm107, %v103, 0
  %v118 = vsel %vm107, %v104, 0
  %v121 = vsel %vm107, %v105, 0
  %v124 = vsel %vm107, %v106, 0
  %126 = vmatpush.xpose.msra.mxu0 0.0
  %127 = vmatpush.xpose.msra.mxu0 0.0
  %128 = vmatpush.xpose.msra.mxu0 0.0
  %129 = vmatpush.xpose.msra.mxu0 0.0
  %130 = vmatpush.xpose.msra.mxu0 0.0
  %131 = vmatpush.xpose.msra.mxu0 0.0
  %132 = vmatpush.xpose.msra.mxu0 0.0
  %133 = vmatpush.xpose.msra.mxu0 0.0
  %134 = vmatpush.xpose.msra.mxu0 0.0
  %135 = vmatpush.xpose.msra.mxu0 0.0
  %136 = vmatpush.xpose.msra.mxu0 0.0
  %137 = vmatpush.xpose.msra.mxu0 0.0
  %138 = vmatpush.xpose.msra.mxu0 %v124
  %139 = vmatpush.xpose.msra.mxu0 %v121
  %140 = vmatpush.xpose.msra.mxu0 %v118
  %141 = vmatpush.xpose.msra.mxu0 %v115
  %142 = vmatmul.f32.gmra.mxu0 %v109
  %v143 = vpop.f32.mrf.mxu0
  %v144 = vadd.f32 0.0, %v143
  %145 = vmatmul.f32.gmra.mxu0 %v112
  %v146 = vpop.f32.mrf.mxu0
  %v147 = vadd.f32 0.0, %v146
  %148 = vdwg.mxu0
  %v149 = vmul.f32 %v144, 2.0
  %v150 = vmul.f32 %v147, 2.0
  %151 = vst.msk [vmem:[%s5] sm:$0xff] %vm30, %v149
  %152 = vst.msk [vmem:[%s5 + $0x8] sm:$0xff] %vm30, %v150
  %v153 = vadd.f32 %v67, %v149
  %v154 = vadd.f32 %v70, %v150
  %s155 = scalar_lea.vmem %s4, 32
  %v156 = vld [vmem:[%s155] sm:$0xff]
  %v157 = vld [vmem:[%s155 + $0x8] sm:$0xff]
  %v158 = vld [vmem:[%s155 + $0x10] sm:$0xff]
  %v159 = vld [vmem:[%s155 + $0x18] sm:$0xff]
  %160 = vrot.lane.b32.xlu0 %v98, 120
  %v161 = vpop.permute.xlu0 %160
  %162 = vrot.lane.b32.xlu0 %v101, 120
  %v163 = vpop.permute.xlu0 %162
  %v164 = vsel %vm107, %v161, 0
  %v166 = vsel %vm107, %v163, 0
  %v169 = vsel %vm107, %v156, 0
  %v172 = vsel %vm107, %v157, 0
  %v175 = vsel %vm107, %v158, 0
  %v178 = vsel %vm107, %v159, 0
  %180 = vmatpush.xpose.msra.mxu0 0.0
  %181 = vmatpush.xpose.msra.mxu0 0.0
  %182 = vmatpush.xpose.msra.mxu0 0.0
  %183 = vmatpush.xpose.msra.mxu0 0.0
  %184 = vmatpush.xpose.msra.mxu0 0.0
  %185 = vmatpush.xpose.msra.mxu0 0.0
  %186 = vmatpush.xpose.msra.mxu0 0.0
  %187 = vmatpush.xpose.msra.mxu0 0.0
  %188 = vmatpush.xpose.msra.mxu0 0.0
  %189 = vmatpush.xpose.msra.mxu0 0.0
  %190 = vmatpush.xpose.msra.mxu0 0.0
  %191 = vmatpush.xpose.msra.mxu0 0.0
  %192 = vmatpush.xpose.msra.mxu0 %v178
  %193 = vmatpush.xpose.msra.mxu0 %v175
  %194 = vmatpush.xpose.msra.mxu0 %v172
  %195 = vmatpush.xpose.msra.mxu0 %v169
  %196 = vmatmul.f32.gmra.mxu0 %v164
  %v197 = vpop.f32.mrf.mxu0
  %v198 = vadd.f32 0.0, %v197
  %199 = vmatmul.f32.gmra.mxu0 %v166
  %v200 = vpop.f32.mrf.mxu0
  %v201 = vadd.f32 0.0, %v200
  %202 = vdwg.mxu0
  %v203 = vmul.f32 %v198, 2.0
  %v204 = vmul.f32 %v201, 2.0
  %s205 = scalar_lea.vmem %s5, 16
  %206 = vst.msk [vmem:[%s205] sm:$0xff] %vm30, %v203
  %207 = vst.msk [vmem:[%s205 + $0x8] sm:$0xff] %vm30, %v204
  %v208 = vadd.f32 %v153, %v203
  %v209 = vadd.f32 %v154, %v204
  %s210 = scalar_lea.vmem %s5, 32
  %211 = vst.msk [vmem:[%s210] sm:$0xff] %vm30, %v208
  %212 = vst.msk [vmem:[%s210 + $0x8] sm:$0xff] %vm30, %v209
  // Predicated region
  $region22: #{lora_mha_forward.5} parent=0 // pred_check
    _
  $region23: #{lora_mha_forward.5} parent=0 // pred_check_branch
    %214 = sbr.rel (0) target = $region25
  $region24: #{lora_mha_forward.5} parent=0 // pred_region
    _
  $region25: #{lora_mha_forward.5} parent=0 // pred_fallthru
    _
  // Predicated region
  $region26: #{lora_mha_forward.5} parent=0 // pred_check
    _
  $region27: #{lora_mha_forward.5} parent=0 // pred_check_branch
    %216 = sbr.rel (0) target = $region29
  $region28: #{lora_mha_forward.5} parent=0 // pred_region
    _
  $region29: #{lora_mha_forward.5} parent=0 // pred_fallthru
    _

// kernel: lora_mha_forward.7
$region0: #{lora_mha_forward.7}
  #allocation0 [shape = 'u32[]', space=smem, size = 0x4, offset = 0x4, fixed_abs, tag = 'smem constant byte address 0x4 - core index']
  #allocation1 [shape = 'u32[72,128]{1,0:T(1,128)}', space=vmem, size = 0x9000, scoped, tag = 'internal scratch']
  %s0 = inlined_call_operand.hbm [shape: f32[16,32], index: 0, kind: input, shape index: {}]
  %s1 = inlined_call_operand.hbm [shape: f32[32,32], index: 1, kind: input, shape index: {}]
  %s2 = inlined_call_operand.vmem [shape: f32[1,32], index: 2, kind: input, shape index: {}]
  %s3 = inlined_call_operand.vmem [shape: f32[16,32], index: 3, kind: output, shape index: {}]
  %s4 = sld [smem:[#allocation0]]
  $region30: #{lora_mha_forward.7} parent=0
    _
  %s6 = ssub.s32 1, %s4
  %s7 = scalar_select 0, %s6, %s4
  $region1: #{lora_mha_forward.7} parent=0
    #allocation2 [shape = 'u8[8192]{0}', space=vmem, size = 0x2000, scoped, tag = 'input window, operand 0, single buffered']
    #allocation3 [shape = 's32[1]{0}', space=sflag, size = 0x4, scoped, tag = 'scoped memory for lora_mha_forward.7']
    #allocation4 [shape = 'u8[16384]{0}', space=vmem, size = 0x4000, scoped, tag = 'input window, operand 1, single buffered']
    #allocation5 [shape = 's32[1]{0}', space=sflag, size = 0x4, scoped, tag = 'scoped memory for lora_mha_forward.7']
    %8 = vsyncpa [#allocation3], 0
    %9 = vsyncpa [#allocation5], 0
    // Predicated region
    $region2: #{lora_mha_forward.7} parent=1 // pred_check
      _
    $region3: #{lora_mha_forward.7} parent=1 // pred_check_branch
      %11 = sbr.rel (0) target = $region5
    $region4: #{lora_mha_forward.7} parent=1 // pred_region
      %13 = vsyncadd [#allocation3], 0
      %s14 = sshll.u32 %s0, 4
      %s15 = int_to_ptr.hbm [resolvable:$true] %s14
      %s16 = sshll.u32 [#allocation2], 4
      %s17 = int_to_ptr.vmem [resolvable:$true] %s16
      %22 = dma.hbm_to_vmem [thread:$0]  %s15, 256, %s17, [#allocation3], 128, 128, 8
    $region5: #{lora_mha_forward.7} parent=1 // pred_fallthru
      _
    // Predicated region
    $region6: #{lora_mha_forward.7} parent=1 // pred_check
      _
    $region7: #{lora_mha_forward.7} parent=1 // pred_check_branch
      %24 = sbr.rel (0) target = $region9
    $region8: #{lora_mha_forward.7} parent=1 // pred_region
      %26 = vsyncadd [#allocation5], 0
      %s27 = sshll.u32 %s1, 4
      %s28 = int_to_ptr.hbm [resolvable:$true] %s27
      %s29 = sshll.u32 [#allocation4], 4
      %s30 = int_to_ptr.vmem [resolvable:$true] %s29
      %35 = dma.hbm_to_vmem [thread:$0]  %s28, 512, %s30, [#allocation5], 128, 128, 8
    $region9: #{lora_mha_forward.7} parent=1 // pred_fallthru
      _
    // Predicated region
    $region10: #{lora_mha_forward.7} parent=1 // pred_check
      _
    $region11: #{lora_mha_forward.7} parent=1 // pred_check_branch
      %37 = sbr.rel (0) target = $region13
    $region12: #{lora_mha_forward.7} parent=1 // pred_region
      _
    $region13: #{lora_mha_forward.7} parent=1 // pred_fallthru
      _
    // Predicated region
    $region14: #{lora_mha_forward.7} parent=1 // pred_check
      _
    $region15: #{lora_mha_forward.7} parent=1 // pred_check_branch
      %39 = sbr.rel (0) target = $region17
    $region16: #{lora_mha_forward.7} parent=1 // pred_region
      %41 = dma.done [#allocation3], 256
    $region17: #{lora_mha_forward.7} parent=1 // pred_fallthru
      _
    // Predicated region
    $region18: #{lora_mha_forward.7} parent=1 // pred_check
      _
    $region19: #{lora_mha_forward.7} parent=1 // pred_check_branch
      %43 = sbr.rel (0) target = $region21
    $region20: #{lora_mha_forward.7} parent=1 // pred_region
      %45 = dma.done [#allocation5], 512
    $region21: #{lora_mha_forward.7} parent=1 // pred_fallthru
      _
    %v46 = vld [vmem:[#allocation2] sm:$0xff]
    %v47 = vld [vmem:[#allocation2 + $0x8] sm:$0xff]
    %v48 = vld [vmem:[#allocation4] sm:$0xff]
    %v49 = vld [vmem:[#allocation4 + $0x8] sm:$0xff]
    %v50 = vld [vmem:[#allocation4 + $0x10] sm:$0xff]
    %v51 = vld [vmem:[#allocation4 + $0x18] sm:$0xff]
    %v52 = vld [vmem:[%s2] sm:$0x1]
    %v54 = vperm.slane %v52, 0
    %vm56 = vcmask 261120
    %v58 = vsel %vm56, %v46, 0
    %v61 = vsel %vm56, %v47, 0
    %v64 = vsel %vm56, %v48, 0
    %v67 = vsel %vm56, %v49, 0
    %v70 = vsel %vm56, %v50, 0
    %v73 = vsel %vm56, %v51, 0
    %75 = vmatpush.xpose.msra.mxu0 0.0
    %76 = vmatpush.xpose.msra.mxu0 0.0
    %77 = vmatpush.xpose.msra.mxu0 0.0
    %78 = vmatpush.xpose.msra.mxu0 0.0
    %79 = vmatpush.xpose.msra.mxu0 0.0
    %80 = vmatpush.xpose.msra.mxu0 0.0
    %81 = vmatpush.xpose.msra.mxu0 0.0
    %82 = vmatpush.xpose.msra.mxu0 0.0
    %83 = vmatpush.xpose.msra.mxu0 0.0
    %84 = vmatpush.xpose.msra.mxu0 0.0
    %85 = vmatpush.xpose.msra.mxu0 0.0
    %86 = vmatpush.xpose.msra.mxu0 0.0
    %87 = vmatpush.xpose.msra.mxu0 %v73
    %88 = vmatpush.xpose.msra.mxu0 %v70
    %89 = vmatpush.xpose.msra.mxu0 %v67
    %90 = vmatpush.xpose.msra.mxu0 %v64
    %91 = vmatmul.f32.gmra.mxu0 %v58
    %v92 = vpop.f32.mrf.mxu0
    %v93 = vadd.f32 %v54, %v92
    %94 = vmatmul.f32.gmra.mxu0 %v61
    %v95 = vpop.f32.mrf.mxu0
    %v96 = vadd.f32 %v54, %v95
    %97 = vdwg.mxu0
    %98 = vst.msk [vmem:[%s3] sm:$0xff] %vm56, %v93
    %99 = vst.msk [vmem:[%s3 + $0x8] sm:$0xff] %vm56, %v96
    // Predicated region
    $region22: #{lora_mha_forward.7} parent=1 // pred_check
      _
    $region23: #{lora_mha_forward.7} parent=1 // pred_check_branch
      %101 = sbr.rel (0) target = $region25
    $region24: #{lora_mha_forward.7} parent=1 // pred_region
      _
    $region25: #{lora_mha_forward.7} parent=1 // pred_fallthru
      _
    // Predicated region
    $region26: #{lora_mha_forward.7} parent=1 // pred_check
      _
    $region27: #{lora_mha_forward.7} parent=1 // pred_check_branch
      %103 = sbr.rel (0) target = $region29
    $region28: #{lora_mha_forward.7} parent=1 // pred_region
      _
    $region29: #{lora_mha_forward.7} parent=1 // pred_fallthru
      _
    %104 = vsyncpa [#allocation3], 1
    %105 = vsyncpa [#allocation5], 1

// kernel: lora_mha_forward.9
$region0: #{lora_mha_forward.9}
  #allocation0 [shape = 'u32[]', space=smem, size = 0x4, offset = 0x4, fixed_abs, tag = 'smem constant byte address 0x4 - core index']
  #allocation1 [shape = 'u32[72,128]{1,0:T(1,128)}', space=vmem, size = 0x9000, scoped, tag = 'internal scratch']
  %s0 = inlined_call_operand.vmem [shape: f32[48,32], index: 0, kind: input, shape index: {}]
  %s1 = inlined_call_operand.vmem [shape: f32[32,32], index: 1, kind: input, shape index: {}]
  %s2 = inlined_call_operand.vmem [shape: f32[1,32], index: 2, kind: input, shape index: {}]
  %s3 = inlined_call_operand.vmem [shape: f32[48,32], index: 3, kind: output, shape index: {}]
  %s4 = sld [smem:[#allocation0]]
  $region22: #{lora_mha_forward.9} parent=0
    _
  %s6 = ssub.s32 1, %s4
  %s7 = scalar_select 0, %s6, %s4
  // Predicated region
  $region2: #{lora_mha_forward.9} parent=0 // pred_check
    _
  $region3: #{lora_mha_forward.9} parent=0 // pred_check_branch
    %9 = sbr.rel (0) target = $region5
  $region4: #{lora_mha_forward.9} parent=0 // pred_region
    _
  $region5: #{lora_mha_forward.9} parent=0 // pred_fallthru
    _
  // Predicated region
  $region6: #{lora_mha_forward.9} parent=0 // pred_check
    _
  $region7: #{lora_mha_forward.9} parent=0 // pred_check_branch
    %11 = sbr.rel (0) target = $region9
  $region8: #{lora_mha_forward.9} parent=0 // pred_region
    _
  $region9: #{lora_mha_forward.9} parent=0 // pred_fallthru
    _
  // Predicated region
  $region10: #{lora_mha_forward.9} parent=0 // pred_check
    _
  $region11: #{lora_mha_forward.9} parent=0 // pred_check_branch
    %13 = sbr.rel (0) target = $region13
  $region12: #{lora_mha_forward.9} parent=0 // pred_region
    _
  $region13: #{lora_mha_forward.9} parent=0 // pred_fallthru
    _
  %v14 = vld [vmem:[%s0] sm:$0xff]
  %v15 = vld [vmem:[%s0 + $0x8] sm:$0xff]
  %v16 = vld [vmem:[%s0 + $0x10] sm:$0xff]
  %v17 = vld [vmem:[%s0 + $0x18] sm:$0xff]
  %v18 = vld [vmem:[%s0 + $0x20] sm:$0xff]
  %v19 = vld [vmem:[%s0 + $0x28] sm:$0xff]
  %v20 = vld [vmem:[%s1] sm:$0xff]
  %v21 = vld [vmem:[%s1 + $0x8] sm:$0xff]
  %v22 = vld [vmem:[%s1 + $0x10] sm:$0xff]
  %v23 = vld [vmem:[%s1 + $0x18] sm:$0xff]
  %v24 = vld [vmem:[%s2] sm:$0x1]
  %v26 = vperm.slane %v24, 0
  %vm28 = vcmask 261120
  %v30 = vsel %vm28, %v14, 0
  %v33 = vsel %vm28, %v15, 0
  %v36 = vsel %vm28, %v16, 0
  %v39 = vsel %vm28, %v17, 0
  %v42 = vsel %vm28, %v18, 0
  %v45 = vsel %vm28, %v19, 0
  %v48 = vsel %vm28, %v20, 0
  %v51 = vsel %vm28, %v21, 0
  %v54 = vsel %vm28, %v22, 0
  %v57 = vsel %vm28, %v23, 0
  %59 = vmatpush.xpose.msra.mxu0 0.0
  %60 = vmatpush.xpose.msra.mxu0 0.0
  %61 = vmatpush.xpose.msra.mxu0 0.0
  %62 = vmatpush.xpose.msra.mxu0 0.0
  %63 = vmatpush.xpose.msra.mxu0 0.0
  %64 = vmatpush.xpose.msra.mxu0 0.0
  %65 = vmatpush.xpose.msra.mxu0 0.0
  %66 = vmatpush.xpose.msra.mxu0 0.0
  %67 = vmatpush.xpose.msra.mxu0 0.0
  %68 = vmatpush.xpose.msra.mxu0 0.0
  %69 = vmatpush.xpose.msra.mxu0 0.0
  %70 = vmatpush.xpose.msra.mxu0 0.0
  %71 = vmatpush.xpose.msra.mxu0 %v57
  %72 = vmatpush.xpose.msra.mxu0 %v54
  %73 = vmatpush.xpose.msra.mxu0 %v51
  %74 = vmatpush.xpose.msra.mxu0 %v48
  %75 = vmatmul.f32.gmra.mxu0 %v30
  %v76 = vpop.f32.mrf.mxu0
  %v77 = vadd.f32 %v26, %v76
  %78 = vmatmul.f32.gmra.mxu0 %v33
  %v79 = vpop.f32.mrf.mxu0
  %v80 = vadd.f32 %v26, %v79
  %81 = vmatmul.f32.gmra.mxu0 %v36
  %v82 = vpop.f32.mrf.mxu0
  %v83 = vadd.f32 %v26, %v82
  %84 = vmatmul.f32.gmra.mxu0 %v39
  %v85 = vpop.f32.mrf.mxu0
  %v86 = vadd.f32 %v26, %v85
  %87 = vmatmul.f32.gmra.mxu0 %v42
  %v88 = vpop.f32.mrf.mxu0
  %v89 = vadd.f32 %v26, %v88
  %90 = vmatmul.f32.gmra.mxu0 %v45
  %v91 = vpop.f32.mrf.mxu0
  %v92 = vadd.f32 %v26, %v91
  %93 = vdwg.mxu0
  %94 = vst.msk [vmem:[%s3] sm:$0xff] %vm28, %v77
  %95 = vst.msk [vmem:[%s3 + $0x8] sm:$0xff] %vm28, %v80
  %96 = vst.msk [vmem:[%s3 + $0x10] sm:$0xff] %vm28, %v83
  %97 = vst.msk [vmem:[%s3 + $0x18] sm:$0xff] %vm28, %v86
  %98 = vst.msk [vmem:[%s3 + $0x20] sm:$0xff] %vm28, %v89
  %99 = vst.msk [vmem:[%s3 + $0x28] sm:$0xff] %vm28, %v92
  // Predicated region
  $region14: #{lora_mha_forward.9} parent=0 // pred_check
    _
  $region15: #{lora_mha_forward.9} parent=0 // pred_check_branch
    %101 = sbr.rel (0) target = $region17
  $region16: #{lora_mha_forward.9} parent=0 // pred_region
    _
  $region17: #{lora_mha_forward.9} parent=0 // pred_fallthru
    _
  // Predicated region
  $region18: #{lora_mha_forward.9} parent=0 // pred_check
    _
  $region19: #{lora_mha_forward.9} parent=0 // pred_check_branch
    %103 = sbr.rel (0) target = $region21
  $region20: #{lora_mha_forward.9} parent=0 // pred_region
    _
  $region21: #{lora_mha_forward.9} parent=0 // pred_fallthru
    _

// kernel: lora_mha_forward.8
$region0: #{lora_mha_forward.8}
  #allocation0 [shape = 'u32[]', space=smem, size = 0x4, offset = 0x4, fixed_abs, tag = 'smem constant byte address 0x4 - core index']
  #allocation1 [shape = 'u32[72,128]{1,0:T(1,128)}', space=vmem, size = 0x9000, scoped, tag = 'internal scratch']
  %s0 = inlined_call_operand.vmem [shape: f32[3,8,8,8], index: 0, kind: input, shape index: {}]
  %s1 = inlined_call_operand.vmem [shape: f32[8,8,8], index: 1, kind: input, shape index: {}]
  %s2 = inlined_call_operand.vmem [shape: f32[3,8,8,8], index: 2, kind: input, shape index: {}]
  %s3 = inlined_call_operand.vmem [shape: f32[3,2,8,8], index: 3, kind: output, shape index: {0}]
  %s4 = inlined_call_operand.vmem [shape: f32[3,8,8,8], index: 4, kind: output, shape index: {1}]
  %5 = xla_tuple %s3, %s4
  %s6 = sld [smem:[#allocation0]]
  $region53: #{lora_mha_forward.8} parent=0
    _
  %s8 = ssub.s32 1, %s6
  %s9 = scalar_select 0, %s8, %s6
  loop: start=0, step=1, limit=5
  $region2: #{lora_mha_forward.8} parent=0 // loop_pre_header
    _
  $region3: #{lora_mha_forward.8} parent=0 // loop_header
    %s11 = sphi 0, %s15
    %p12 = scmp.ge.s32.totalorder %s11, 5
    %s18 = sphi 0, %s30
    %s19 = sphi 0, %s26
    %s20 = sphi 0, %s18
    %s21 = sphi 0, %s19
    %s22 = sphi 0, %s20
    %s23 = sphi 0, %s21
    %s35 = sphi 0, %s37
    %s38 = sphi 0, %s35
    %s39 = sphi 0, %s38
    %s55 = sphi 0, %s39
    %s61 = sphi 0, %s63
    %s64 = sphi 0, %s61
    %s65 = sphi 0, %s64
    %s81 = sphi 0, %s65
    %s89 = sphi 0, %s91
    %s92 = sphi 0, %s89
    %s93 = sphi 0, %s92
    %s109 = sphi 0, %s93
    %s117 = sphi 0, %s119
    %s120 = sphi 0, %s117
    %s121 = sphi 0, %s120
    %s137 = sphi 0, %s121
    %s145 = sphi 0, %s147
    %s148 = sphi 0, %s145
    %s149 = sphi 0, %s148
    %s165 = sphi 0, %s149
  $region4: #{lora_mha_forward.8} parent=0 // loop_header_branch
    %14 = sbr.rel (%p12) target = $region8
  $region5: #{lora_mha_forward.8} parent=0 // loop_body
    %s16 = ssub.s32 %s11, 1
    %s17 = ssub.s32 %s11, 2
    %s24 = sadd.s32 1, %s19
    %p25 = scmp.ge.s32.totalorder %s24, 1
    %s26 = scalar_select %p25, 0, %s24
    %s27 = sadd.s32 1, %s18
    %s28 = scalar_select %p25, %s27, %s18
    %p29 = scmp.ge.s32.totalorder %s28, 3
    %s30 = scalar_select %p29, 0, %s28
    %s31 = ssub.s32 %s18, %s30
    %s32 = ssub.s32 %s19, %s26
    %s33 = sor.u32 %s31, %s32
    %p34 = scmp.eq.s32.totalorder %s33, 0
    %s36 = sadd.s32 %s35, 1
    %s37 = scalar_select %p34, %s35, %s36
    %p40 = pneg %p34
    %p41 = scmp.eq.s32.totalorder %s11, 2
    %p42 = por %p40, %p41
    %p43 = scmp.ne.s32.totalorder %s35, %s38
    %p44 = scmp.eq.s32.totalorder %s11, 0
    %p45 = por %p43, %p44
    %p46 = scmp.ne.s32.totalorder %s35, %s38
    %p47 = scmp.eq.s32.totalorder %s16, 2
    %p48 = por %p46, %p47
    %p49 = scmp.ne.s32.totalorder %s38, %s39
    %p50 = scmp.eq.s32.totalorder %s16, 0
    %p51 = por %p49, %p50
    %p52 = scmp.ne.s32.totalorder %s38, %s39
    %p53 = scmp.eq.s32.totalorder %s17, 2
    %p54 = por %p52, %p53
    %p56 = scmp.ne.s32.totalorder %s39, %s55
    %p57 = scmp.eq.s32.totalorder %s17, 0
    %p58 = por %p56, %p57
    %s59 = ssub.s32 %s19, %s26
    %p60 = scmp.eq.s32.totalorder %s59, 0
    %s62 = sadd.s32 %s61, 1
    %s63 = scalar_select %p60, %s61, %s62
    %p66 = pneg %p60
    %p67 = scmp.eq.s32.totalorder %s11, 2
    %p68 = por %p66, %p67
    %p69 = scmp.ne.s32.totalorder %s61, %s64
    %p70 = scmp.eq.s32.totalorder %s11, 0
    %p71 = por %p69, %p70
    %p72 = scmp.ne.s32.totalorder %s61, %s64
    %p73 = scmp.eq.s32.totalorder %s16, 2
    %p74 = por %p72, %p73
    %p75 = scmp.ne.s32.totalorder %s64, %s65
    %p76 = scmp.eq.s32.totalorder %s16, 0
    %p77 = por %p75, %p76
    %p78 = scmp.ne.s32.totalorder %s64, %s65
    %p79 = scmp.eq.s32.totalorder %s17, 2
    %p80 = por %p78, %p79
    %p82 = scmp.ne.s32.totalorder %s65, %s81
    %p83 = scmp.eq.s32.totalorder %s17, 0
    %p84 = por %p82, %p83
    %s85 = ssub.s32 %s18, %s30
    %s86 = ssub.s32 %s19, %s26
    %s87 = sor.u32 %s85, %s86
    %p88 = scmp.eq.s32.totalorder %s87, 0
    %s90 = sadd.s32 %s89, 1
    %s91 = scalar_select %p88, %s89, %s90
    %p94 = pneg %p88
    %p95 = scmp.eq.s32.totalorder %s11, 2
    %p96 = por %p94, %p95
    %p97 = scmp.ne.s32.totalorder %s89, %s92
    %p98 = scmp.eq.s32.totalorder %s11, 0
    %p99 = por %p97, %p98
    %p100 = scmp.ne.s32.totalorder %s89, %s92
    %p101 = scmp.eq.s32.totalorder %s16, 2
    %p102 = por %p100, %p101
    %p103 = scmp.ne.s32.totalorder %s92, %s93
    %p104 = scmp.eq.s32.totalorder %s16, 0
    %p105 = por %p103, %p104
    %p106 = scmp.ne.s32.totalorder %s92, %s93
    %p107 = scmp.eq.s32.totalorder %s17, 2
    %p108 = por %p106, %p107
    %p110 = scmp.ne.s32.totalorder %s93, %s109
    %p111 = scmp.eq.s32.totalorder %s17, 0
    %p112 = por %p110, %p111
    %s113 = ssub.s32 %s18, %s30
    %s114 = ssub.s32 %s19, %s26
    %s115 = sor.u32 %s113, %s114
    %p116 = scmp.eq.s32.totalorder %s115, 0
    %s118 = sadd.s32 %s117, 1
    %s119 = scalar_select %p116, %s117, %s118
    %p122 = pneg %p116
    %p123 = scmp.eq.s32.totalorder %s11, 2
    %p124 = por %p122, %p123
    %p125 = scmp.ne.s32.totalorder %s117, %s120
    %p126 = scmp.eq.s32.totalorder %s11, 0
    %p127 = por %p125, %p126
    %p128 = scmp.ne.s32.totalorder %s117, %s120
    %p129 = scmp.eq.s32.totalorder %s16, 2
    %p130 = por %p128, %p129
    %p131 = scmp.ne.s32.totalorder %s120, %s121
    %p132 = scmp.eq.s32.totalorder %s16, 0
    %p133 = por %p131, %p132
    %p134 = scmp.ne.s32.totalorder %s120, %s121
    %p135 = scmp.eq.s32.totalorder %s17, 2
    %p136 = por %p134, %p135
    %p138 = scmp.ne.s32.totalorder %s121, %s137
    %p139 = scmp.eq.s32.totalorder %s17, 0
    %p140 = por %p138, %p139
    %s141 = ssub.s32 %s18, %s30
    %s142 = ssub.s32 %s19, %s26
    %s143 = sor.u32 %s141, %s142
    %p144 = scmp.eq.s32.totalorder %s143, 0
    %s146 = sadd.s32 %s145, 1
    %s147 = scalar_select %p144, %s145, %s146
    %p150 = pneg %p144
    %p151 = scmp.eq.s32.totalorder %s11, 2
    %p152 = por %p150, %p151
    %p153 = scmp.ne.s32.totalorder %s145, %s148
    %p154 = scmp.eq.s32.totalorder %s11, 0
    %p155 = por %p153, %p154
    %p156 = scmp.ne.s32.totalorder %s145, %s148
    %p157 = scmp.eq.s32.totalorder %s16, 2
    %p158 = por %p156, %p157
    %p159 = scmp.ne.s32.totalorder %s148, %s149
    %p160 = scmp.eq.s32.totalorder %s16, 0
    %p161 = por %p159, %p160
    %p162 = scmp.ne.s32.totalorder %s148, %s149
    %p163 = scmp.eq.s32.totalorder %s17, 2
    %p164 = por %p162, %p163
    %p166 = scmp.ne.s32.totalorder %s149, %s165
    %p167 = scmp.eq.s32.totalorder %s17, 0
    %p168 = por %p166, %p167
    %p169 = scmp.le.s32.totalorder 1, %s11
    %p170 = scmp.lt.s32.totalorder %s11, 4
    %p171 = pnand %p169, %p170
    %p172 = pneg %p171
    // Predicated region
    $region9: #{lora_mha_forward.8} parent=5 // pred_check
      _
    $region10: #{lora_mha_forward.8} parent=5 // pred_check_branch
      %174 = sbr.rel (%p171) target = $region12
    $region11: #{lora_mha_forward.8} parent=5 // pred_region
      %s175 = ssub.s32 %s11, 1
      // Predicated region
      $region13: #{lora_mha_forward.8} parent=11 // pred_check
        %p176 = pneg %p77
      $region14: #{lora_mha_forward.8} parent=11 // pred_check_branch
        %178 = sbr.rel (%p176) target = $region16
      $region15: #{lora_mha_forward.8} parent=11 // pred_region
        %s179 = smul.u32 8, %s21
        %p180 = scmp.lt.s32.totalorder %s179, 7
        %s181 = scalar_select %p180, %s179, 7
        %s182 = smul.addr %s181, 8
        %s183 = scalar_lea.vmem %s1, %s182
        %s184 = smul.u32 8, %s21
      $region16: #{lora_mha_forward.8} parent=11 // pred_fallthru
        _
    $region12: #{lora_mha_forward.8} parent=5 // pred_fallthru
      _
    %p185 = scmp.lt.s32.totalorder %s11, 3
    // Predicated region
    $region17: #{lora_mha_forward.8} parent=5 // pred_check
      %p186 = pneg %p185
    $region18: #{lora_mha_forward.8} parent=5 // pred_check_branch
      %188 = sbr.rel (%p186) target = $region20
    $region19: #{lora_mha_forward.8} parent=5 // pred_region
      // Predicated region
      $region21: #{lora_mha_forward.8} parent=19 // pred_check
        %p189 = pneg %p45
      $region22: #{lora_mha_forward.8} parent=19 // pred_check_branch
        %191 = sbr.rel (%p189) target = $region24
      $region23: #{lora_mha_forward.8} parent=19 // pred_region
        %s192 = smul.u32 8, %s19
        %p193 = scmp.lt.s32.totalorder %s18, 2
        %s194 = scalar_select %p193, %s18, 2
        %p195 = scmp.lt.s32.totalorder %s192, 7
        %s196 = scalar_select %p195, %s192, 7
        %s197 = smul.addr %s194, 8
        %s198 = sadd.s32 %s196, %s197
        %s199 = smul.addr %s198, 8
        %s200 = scalar_lea.vmem %s0, %s199
        %s201 = smul.u32 8, %s19
      $region24: #{lora_mha_forward.8} parent=19 // pred_fallthru
        _
      // Predicated region
      $region25: #{lora_mha_forward.8} parent=19 // pred_check
        %p202 = pneg %p99
      $region26: #{lora_mha_forward.8} parent=19 // pred_check_branch
        %204 = sbr.rel (%p202) target = $region28
      $region27: #{lora_mha_forward.8} parent=19 // pred_region
        %s205 = smul.u32 8, %s19
        %p206 = scmp.lt.s32.totalorder %s18, 2
        %s207 = scalar_select %p206, %s18, 2
        %p208 = scmp.lt.s32.totalorder %s205, 7
        %s209 = scalar_select %p208, %s205, 7
        %s210 = smul.addr %s207, 8
        %s211 = sadd.s32 %s209, %s210
        %s212 = smul.addr %s211, 8
        %s213 = scalar_lea.vmem %s2, %s212
        %s214 = smul.u32 8, %s19
      $region28: #{lora_mha_forward.8} parent=19 // pred_fallthru
        _
    $region20: #{lora_mha_forward.8} parent=5 // pred_fallthru
      _
    %p215 = scmp.le.s32.totalorder 1, %s11
    %p216 = scmp.lt.s32.totalorder %s11, 4
    %p217 = pnand %p215, %p216
    %p218 = pneg %p217
    // Predicated region
    $region29: #{lora_mha_forward.8} parent=5 // pred_check
      _
    $region30: #{lora_mha_forward.8} parent=5 // pred_check_branch
      %220 = sbr.rel (%p217) target = $region32
    $region31: #{lora_mha_forward.8} parent=5 // pred_region
      %s221 = ssub.s32 %s11, 1
      %s222 = smul.u32 8, %s21
      %p223 = scmp.lt.s32.totalorder %s20, 2
      %s224 = scalar_select %p223, %s20, 2
      %p225 = scmp.lt.s32.totalorder %s222, 7
      %s226 = scalar_select %p225, %s222, 7
      %s227 = smul.addr %s224, 8
      %s228 = sadd.s32 %s226, %s227
      %s229 = smul.addr %s228, 8
      %s230 = scalar_lea.vmem %s0, %s229
      %p231 = pneg %p51
      %p232 = pneg %p48
      %s233 = smul.u32 8, %s21
      %p234 = scmp.lt.s32.totalorder %s233, 7
      %s235 = scalar_select %p234, %s233, 7
      %s236 = smul.addr %s235, 8
      %s237 = scalar_lea.vmem %s1, %s236
      %p238 = pneg %p77
      %p239 = pneg %p74
      %s240 = smul.u32 8, %s21
      %p241 = scmp.lt.s32.totalorder %s20, 2
      %s242 = scalar_select %p241, %s20, 2
      %p243 = scmp.lt.s32.totalorder %s240, 7
      %s244 = scalar_select %p243, %s240, 7
      %s245 = smul.addr %s242, 8
      %s246 = sadd.s32 %s244, %s245
      %s247 = smul.addr %s246, 8
      %s248 = scalar_lea.vmem %s2, %s247
      %p249 = pneg %p105
      %p250 = pneg %p102
      %p251 = pneg %p133
      %p252 = pneg %p130
      %s253 = smul.u32 2, %s21
      %p254 = scmp.lt.s32.totalorder %s20, 2
      %s255 = scalar_select %p254, %s20, 2
      %p256 = scmp.lt.s32.totalorder %s253, 1
      %s257 = scalar_select %p256, %s253, 1
      %s258 = smul.addr %s255, 2
      %s259 = sadd.s32 %s257, %s258
      %s260 = smul.addr %s259, 8
      %s261 = scalar_lea.vmem %s3, %s260
      %p262 = pneg %p161
      %p263 = pneg %p158
      %s264 = smul.u32 8, %s21
      %p265 = scmp.lt.s32.totalorder %s20, 2
      %s266 = scalar_select %p265, %s20, 2
      %p267 = scmp.lt.s32.totalorder %s264, 7
      %s268 = scalar_select %p267, %s264, 7
      %s269 = smul.addr %s266, 8
      %s270 = sadd.s32 %s268, %s269
      %s271 = smul.addr %s270, 8
      %s272 = scalar_lea.vmem %s4, %s271
      %s273 = smul.u32 8, %s21
      %p274 = scmp.lt.s32.totalorder %s20, 2
      %s275 = scalar_select %p274, %s20, 2
      %p276 = scmp.lt.s32.totalorder %s273, 7
      %s277 = scalar_select %p276, %s273, 7
      %s278 = smul.addr %s275, 8
      %s279 = sadd.s32 %s277, %s278
      %s280 = smul.addr %s279, 8
      %s281 = scalar_lea.vmem %s0, %s280
      %s282 = smul.u32 8, %s21
      %s283 = smul.u32 8, %s21
      %p284 = scmp.lt.s32.totalorder %s283, 7
      %s285 = scalar_select %p284, %s283, 7
      %s286 = smul.addr %s285, 8
      %s287 = scalar_lea.vmem %s1, %s286
      %s288 = smul.u32 8, %s21
      %s289 = smul.u32 8, %s21
      %p290 = scmp.lt.s32.totalorder %s20, 2
      %s291 = scalar_select %p290, %s20, 2
      %p292 = scmp.lt.s32.totalorder %s289, 7
      %s293 = scalar_select %p292, %s289, 7
      %s294 = smul.addr %s291, 8
      %s295 = sadd.s32 %s293, %s294
      %s296 = smul.addr %s295, 8
      %s297 = scalar_lea.vmem %s2, %s296
      %s298 = smul.u32 8, %s21
      %s299 = smul.u32 2, %s21
      %p300 = scmp.lt.s32.totalorder %s20, 2
      %s301 = scalar_select %p300, %s20, 2
      %p302 = scmp.lt.s32.totalorder %s299, 1
      %s303 = scalar_select %p302, %s299, 1
      %s304 = smul.addr %s301, 2
      %s305 = sadd.s32 %s303, %s304
      %s306 = smul.addr %s305, 8
      %s307 = scalar_lea.vmem %s3, %s306
      %s308 = smul.u32 2, %s21
      %s309 = smul.u32 8, %s21
      %p310 = scmp.lt.s32.totalorder %s20, 2
      %s311 = scalar_select %p310, %s20, 2
      %p312 = scmp.lt.s32.totalorder %s309, 7
      %s313 = scalar_select %p312, %s309, 7
      %s314 = smul.addr %s311, 8
      %s315 = sadd.s32 %s313, %s314
      %s316 = smul.addr %s315, 8
      %s317 = scalar_lea.vmem %s4, %s316
      %s318 = smul.u32 8, %s21
      %v319 = vld [vmem:[%s281] sm:$0xff]
      %v320 = vld [vmem:[%s281 + $0x8] sm:$0xff]
      %v321 = vld [vmem:[%s281 + $0x10] sm:$0xff]
      %v322 = vld [vmem:[%s281 + $0x18] sm:$0xff]
      %v323 = vld [vmem:[%s281 + $0x20] sm:$0xff]
      %v324 = vld [vmem:[%s281 + $0x28] sm:$0xff]
      %v325 = vld [vmem:[%s281 + $0x30] sm:$0xff]
      %v326 = vld [vmem:[%s281 + $0x38] sm:$0xff]
      %v327 = vmul.f32 %v319, 0.35355338
      %v328 = vmul.f32 %v320, 0.35355338
      %v329 = vmul.f32 %v321, 0.35355338
      %v330 = vmul.f32 %v322, 0.35355338
      %v331 = vmul.f32 %v323, 0.35355338
      %v332 = vmul.f32 %v324, 0.35355338
      %v333 = vmul.f32 %v325, 0.35355338
      %v334 = vmul.f32 %v326, 0.35355338
      %v335 = vld [vmem:[%s287] sm:$0xff]
      %v336 = vld [vmem:[%s287 + $0x8] sm:$0xff]
      %v337 = vld [vmem:[%s287 + $0x10] sm:$0xff]
      %v338 = vld [vmem:[%s287 + $0x18] sm:$0xff]
      %v339 = vld [vmem:[%s287 + $0x20] sm:$0xff]
      %v340 = vld [vmem:[%s287 + $0x28] sm:$0xff]
      %v341 = vld [vmem:[%s287 + $0x30] sm:$0xff]
      %v342 = vld [vmem:[%s287 + $0x38] sm:$0xff]
      %vm343 = vcmask 64512
      %v345 = vsel %vm343, %v327, 0
      %v348 = vsel %vm343, %v335, 0
      %350 = vmatpush.xpose.msra.mxu0 0.0
      %351 = vmatpush.xpose.msra.mxu0 0.0
      %352 = vmatpush.xpose.msra.mxu0 0.0
      %353 = vmatpush.xpose.msra.mxu0 0.0
      %354 = vmatpush.xpose.msra.mxu0 0.0
      %355 = vmatpush.xpose.msra.mxu0 0.0
      %356 = vmatpush.xpose.msra.mxu0 0.0
      %357 = vmatpush.xpose.msra.mxu0 0.0
      %358 = vmatpush.xpose.msra.mxu0 0.0
      %359 = vmatpush.xpose.msra.mxu0 0.0
      %360 = vmatpush.xpose.msra.mxu0 0.0
      %361 = vmatpush.xpose.msra.mxu0 0.0
      %362 = vmatpush.xpose.msra.mxu0 0.0
      %363 = vmatpush.xpose.msra.mxu0 0.0
      %364 = vmatpush.xpose.msra.mxu0 0.0
      %365 = vmatpush.xpose.msra.mxu0 %v348
      %366 = vmatmul.f32.gmra.mxu0 %v345
      %v367 = vpop.f32.mrf.mxu0
      %v368 = vadd.f32 0.0, %v367
      %369 = vdwg.mxu0
      %v371 = vsel %vm343, %v328, 0
      %v374 = vsel %vm343, %v336, 0
      %376 = vmatpush.xpose.msra.mxu0 0.0
      %377 = vmatpush.xpose.msra.mxu0 0.0
      %378 = vmatpush.xpose.msra.mxu0 0.0
      %379 = vmatpush.xpose.msra.mxu0 0.0
      %380 = vmatpush.xpose.msra.mxu0 0.0
      %381 = vmatpush.xpose.msra.mxu0 0.0
      %382 = vmatpush.xpose.msra.mxu0 0.0
      %383 = vmatpush.xpose.msra.mxu0 0.0
      %384 = vmatpush.xpose.msra.mxu0 0.0
      %385 = vmatpush.xpose.msra.mxu0 0.0
      %386 = vmatpush.xpose.msra.mxu0 0.0
      %387 = vmatpush.xpose.msra.mxu0 0.0
      %388 = vmatpush.xpose.msra.mxu0 0.0
      %389 = vmatpush.xpose.msra.mxu0 0.0
      %390 = vmatpush.xpose.msra.mxu0 0.0
      %391 = vmatpush.xpose.msra.mxu0 %v374
      %392 = vmatmul.f32.gmra.mxu0 %v371
      %v393 = vpop.f32.mrf.mxu0
      %v394 = vadd.f32 0.0, %v393
      %395 = vdwg.mxu0
      %v397 = vsel %vm343, %v329, 0
      %v400 = vsel %vm343, %v337, 0
      %402 = vmatpush.xpose.msra.mxu0 0.0
      %403 = vmatpush.xpose.msra.mxu0 0.0
      %404 = vmatpush.xpose.msra.mxu0 0.0
      %405 = vmatpush.xpose.msra.mxu0 0.0
      %406 = vmatpush.xpose.msra.mxu0 0.0
      %407 = vmatpush.xpose.msra.mxu0 0.0
      %408 = vmatpush.xpose.msra.mxu0 0.0
      %409 = vmatpush.xpose.msra.mxu0 0.0
      %410 = vmatpush.xpose.msra.mxu0 0.0
      %411 = vmatpush.xpose.msra.mxu0 0.0
      %412 = vmatpush.xpose.msra.mxu0 0.0
      %413 = vmatpush.xpose.msra.mxu0 0.0
      %414 = vmatpush.xpose.msra.mxu0 0.0
      %415 = vmatpush.xpose.msra.mxu0 0.0
      %416 = vmatpush.xpose.msra.mxu0 0.0
      %417 = vmatpush.xpose.msra.mxu0 %v400
      %418 = vmatmul.f32.gmra.mxu0 %v397
      %v419 = vpop.f32.mrf.mxu0
      %v420 = vadd.f32 0.0, %v419
      %421 = vdwg.mxu0
      %v423 = vsel %vm343, %v330, 0
      %v426 = vsel %vm343, %v338, 0
      %428 = vmatpush.xpose.msra.mxu0 0.0
      %429 = vmatpush.xpose.msra.mxu0 0.0
      %430 = vmatpush.xpose.msra.mxu0 0.0
      %431 = vmatpush.xpose.msra.mxu0 0.0
      %432 = vmatpush.xpose.msra.mxu0 0.0
      %433 = vmatpush.xpose.msra.mxu0 0.0
      %434 = vmatpush.xpose.msra.mxu0 0.0
      %435 = vmatpush.xpose.msra.mxu0 0.0
      %436 = vmatpush.xpose.msra.mxu0 0.0
      %437 = vmatpush.xpose.msra.mxu0 0.0
      %438 = vmatpush.xpose.msra.mxu0 0.0
      %439 = vmatpush.xpose.msra.mxu0 0.0
      %440 = vmatpush.xpose.msra.mxu0 0.0
      %441 = vmatpush.xpose.msra.mxu0 0.0
      %442 = vmatpush.xpose.msra.mxu0 0.0
      %443 = vmatpush.xpose.msra.mxu0 %v426
      %444 = vmatmul.f32.gmra.mxu0 %v423
      %v445 = vpop.f32.mrf.mxu0
      %v446 = vadd.f32 0.0, %v445
      %447 = vdwg.mxu0
      %v449 = vsel %vm343, %v331, 0
      %v452 = vsel %vm343, %v339, 0
      %454 = vmatpush.xpose.msra.mxu0 0.0
      %455 = vmatpush.xpose.msra.mxu0 0.0
      %456 = vmatpush.xpose.msra.mxu0 0.0
      %457 = vmatpush.xpose.msra.mxu0 0.0
      %458 = vmatpush.xpose.msra.mxu0 0.0
      %459 = vmatpush.xpose.msra.mxu0 0.0
      %460 = vmatpush.xpose.msra.mxu0 0.0
      %461 = vmatpush.xpose.msra.mxu0 0.0
      %462 = vmatpush.xpose.msra.mxu0 0.0
      %463 = vmatpush.xpose.msra.mxu0 0.0
      %464 = vmatpush.xpose.msra.mxu0 0.0
      %465 = vmatpush.xpose.msra.mxu0 0.0
      %466 = vmatpush.xpose.msra.mxu0 0.0
      %467 = vmatpush.xpose.msra.mxu0 0.0
      %468 = vmatpush.xpose.msra.mxu0 0.0
      %469 = vmatpush.xpose.msra.mxu0 %v452
      %470 = vmatmul.f32.gmra.mxu0 %v449
      %v471 = vpop.f32.mrf.mxu0
      %v472 = vadd.f32 0.0, %v471
      %473 = vdwg.mxu0
      %v475 = vsel %vm343, %v332, 0
      %v478 = vsel %vm343, %v340, 0
      %480 = vmatpush.xpose.msra.mxu0 0.0
      %481 = vmatpush.xpose.msra.mxu0 0.0
      %482 = vmatpush.xpose.msra.mxu0 0.0
      %483 = vmatpush.xpose.msra.mxu0 0.0
      %484 = vmatpush.xpose.msra.mxu0 0.0
      %485 = vmatpush.xpose.msra.mxu0 0.0
      %486 = vmatpush.xpose.msra.mxu0 0.0
      %487 = vmatpush.xpose.msra.mxu0 0.0
      %488 = vmatpush.xpose.msra.mxu0 0.0
      %489 = vmatpush.xpose.msra.mxu0 0.0
      %490 = vmatpush.xpose.msra.mxu0 0.0
      %491 = vmatpush.xpose.msra.mxu0 0.0
      %492 = vmatpush.xpose.msra.mxu0 0.0
      %493 = vmatpush.xpose.msra.mxu0 0.0
      %494 = vmatpush.xpose.msra.mxu0 0.0
      %495 = vmatpush.xpose.msra.mxu0 %v478
      %496 = vmatmul.f32.gmra.mxu0 %v475
      %v497 = vpop.f32.mrf.mxu0
      %v498 = vadd.f32 0.0, %v497
      %499 = vdwg.mxu0
      %v501 = vsel %vm343, %v333, 0
      %v504 = vsel %vm343, %v341, 0
      %506 = vmatpush.xpose.msra.mxu0 0.0
      %507 = vmatpush.xpose.msra.mxu0 0.0
      %508 = vmatpush.xpose.msra.mxu0 0.0
      %509 = vmatpush.xpose.msra.mxu0 0.0
      %510 = vmatpush.xpose.msra.mxu0 0.0
      %511 = vmatpush.xpose.msra.mxu0 0.0
      %512 = vmatpush.xpose.msra.mxu0 0.0
      %513 = vmatpush.xpose.msra.mxu0 0.0
      %514 = vmatpush.xpose.msra.mxu0 0.0
      %515 = vmatpush.xpose.msra.mxu0 0.0
      %516 = vmatpush.xpose.msra.mxu0 0.0
      %517 = vmatpush.xpose.msra.mxu0 0.0
      %518 = vmatpush.xpose.msra.mxu0 0.0
      %519 = vmatpush.xpose.msra.mxu0 0.0
      %520 = vmatpush.xpose.msra.mxu0 0.0
      %521 = vmatpush.xpose.msra.mxu0 %v504
      %522 = vmatmul.f32.gmra.mxu0 %v501
      %v523 = vpop.f32.mrf.mxu0
      %v524 = vadd.f32 0.0, %v523
      %525 = vdwg.mxu0
      %v527 = vsel %vm343, %v334, 0
      %v530 = vsel %vm343, %v342, 0
      %532 = vmatpush.xpose.msra.mxu0 0.0
      %533 = vmatpush.xpose.msra.mxu0 0.0
      %534 = vmatpush.xpose.msra.mxu0 0.0
      %535 = vmatpush.xpose.msra.mxu0 0.0
      %536 = vmatpush.xpose.msra.mxu0 0.0
      %537 = vmatpush.xpose.msra.mxu0 0.0
      %538 = vmatpush.xpose.msra.mxu0 0.0
      %539 = vmatpush.xpose.msra.mxu0 0.0
      %540 = vmatpush.xpose.msra.mxu0 0.0
      %541 = vmatpush.xpose.msra.mxu0 0.0
      %542 = vmatpush.xpose.msra.mxu0 0.0
      %543 = vmatpush.xpose.msra.mxu0 0.0
      %544 = vmatpush.xpose.msra.mxu0 0.0
      %545 = vmatpush.xpose.msra.mxu0 0.0
      %546 = vmatpush.xpose.msra.mxu0 0.0
      %547 = vmatpush.xpose.msra.mxu0 %v530
      %548 = vmatmul.f32.gmra.mxu0 %v527
      %v549 = vpop.f32.mrf.mxu0
      %v550 = vadd.f32 0.0, %v549
      %551 = vdwg.mxu0
      %v552 = vsel %vm343, %v368, -inf
      %553 = vmax.xlane.f32.xlu0 %v552
      %v554 = vpop.xlane.xlu0 %553
      %v555 = vsel %vm343, %v394, -inf
      %556 = vmax.xlane.f32.xlu0 %v555
      %v557 = vpop.xlane.xlu0 %556
      %v558 = vsel %vm343, %v420, -inf
      %559 = vmax.xlane.f32.xlu0 %v558
      %v560 = vpop.xlane.xlu0 %559
      %v561 = vsel %vm343, %v446, -inf
      %562 = vmax.xlane.f32.xlu0 %v561
      %v563 = vpop.xlane.xlu0 %562
      %v564 = vsel %vm343, %v472, -inf
      %565 = vmax.xlane.f32.xlu0 %v564
      %v566 = vpop.xlane.xlu0 %565
      %v567 = vsel %vm343, %v498, -inf
      %568 = vmax.xlane.f32.xlu0 %v567
      %v569 = vpop.xlane.xlu0 %568
      %v570 = vsel %vm343, %v524, -inf
      %571 = vmax.xlane.f32.xlu0 %v570
      %v572 = vpop.xlane.xlu0 %571
      %v573 = vsel %vm343, %v550, -inf
      %574 = vmax.xlane.f32.xlu0 %v573
      %v575 = vpop.xlane.xlu0 %574
      %v576 = vsub.f32 %v368, %v554
      %v577 = vsub.f32 %v394, %v557
      %v578 = vsub.f32 %v420, %v560
      %v579 = vsub.f32 %v446, %v563
      %v580 = vsub.f32 %v472, %v566
      %v581 = vsub.f32 %v498, %v569
      %v582 = vsub.f32 %v524, %v572
      %v583 = vsub.f32 %v550, %v575
      %v584 = vmul.f32 %v576, 1.442695
      %v585 = vpow.pop %v584
      %v586 = vmul.f32 %v577, 1.442695
      %v587 = vpow.pop %v586
      %v588 = vmul.f32 %v578, 1.442695
      %v589 = vpow.pop %v588
      %v590 = vmul.f32 %v579, 1.442695
      %v591 = vpow.pop %v590
      %v592 = vmul.f32 %v580, 1.442695
      %v593 = vpow.pop %v592
      %v594 = vmul.f32 %v581, 1.442695
      %v595 = vpow.pop %v594
      %v596 = vmul.f32 %v582, 1.442695
      %v597 = vpow.pop %v596
      %v598 = vmul.f32 %v583, 1.442695
      %v599 = vpow.pop %v598
      %v600 = vsel %vm343, %v585, 0.0
      %601 = vadd.xlane.f32.xlu0 %v600
      %v602 = vpop.xlane.xlu0 %601
      %v603 = vsel %vm343, %v587, 0.0
      %604 = vadd.xlane.f32.xlu0 %v603
      %v605 = vpop.xlane.xlu0 %604
      %v606 = vsel %vm343, %v589, 0.0
      %607 = vadd.xlane.f32.xlu0 %v606
      %v608 = vpop.xlane.xlu0 %607
      %v609 = vsel %vm343, %v591, 0.0
      %610 = vadd.xlane.f32.xlu0 %v609
      %v611 = vpop.xlane.xlu0 %610
      %v612 = vsel %vm343, %v593, 0.0
      %613 = vadd.xlane.f32.xlu0 %v612
      %v614 = vpop.xlane.xlu0 %613
      %v615 = vsel %vm343, %v595, 0.0
      %616 = vadd.xlane.f32.xlu0 %v615
      %v617 = vpop.xlane.xlu0 %616
      %v618 = vsel %vm343, %v597, 0.0
      %619 = vadd.xlane.f32.xlu0 %v618
      %v620 = vpop.xlane.xlu0 %619
      %v621 = vsel %vm343, %v599, 0.0
      %622 = vadd.xlane.f32.xlu0 %v621
      %v623 = vpop.xlane.xlu0 %622
      %v624 = vrcp.pop %v602
      %v625 = vmul.f32 %v602, %v624
      %v626 = vsub.f32 1.0, %v625
      %v627 = vmul.f32 %v624, %v626
      %v628 = vadd.f32 %v624, %v627
      %vm629 = vweird.f32 %v602
      %vm630 = vweird.f32 %v624
      %vm631 = vmor %vm629, %vm630
      %v632 = vsel %vm631, %v624, %v628
      %v633 = vand.u32 2147483647, %v602
      %vm634 = vcmp.eq.f32.partialorder %v633, 8.507059e+37
      %v635 = vand.u32 %v602, 2147483648
      %v636 = vor.u32 1.1754944e-38, %v635
      %v637 = vsel %vm634, %v636, %v632
      %v638 = vmul.f32 %v585, %v637
      %v639 = vrcp.pop %v605
      %v640 = vmul.f32 %v605, %v639
      %v641 = vsub.f32 1.0, %v640
      %v642 = vmul.f32 %v639, %v641
      %v643 = vadd.f32 %v639, %v642
      %vm644 = vweird.f32 %v605
      %vm645 = vweird.f32 %v639
      %vm646 = vmor %vm644, %vm645
      %v647 = vsel %vm646, %v639, %v643
      %v648 = vand.u32 2147483647, %v605
      %vm649 = vcmp.eq.f32.partialorder %v648, 8.507059e+37
      %v650 = vand.u32 %v605, 2147483648
      %v651 = vor.u32 1.1754944e-38, %v650
      %v652 = vsel %vm649, %v651, %v647
      %v653 = vmul.f32 %v587, %v652
      %v654 = vrcp.pop %v608
      %v655 = vmul.f32 %v608, %v654
      %v656 = vsub.f32 1.0, %v655
      %v657 = vmul.f32 %v654, %v656
      %v658 = vadd.f32 %v654, %v657
      %vm659 = vweird.f32 %v608
      %vm660 = vweird.f32 %v654
      %vm661 = vmor %vm659, %vm660
      %v662 = vsel %vm661, %v654, %v658
      %v663 = vand.u32 2147483647, %v608
      %vm664 = vcmp.eq.f32.partialorder %v663, 8.507059e+37
      %v665 = vand.u32 %v608, 2147483648
      %v666 = vor.u32 1.1754944e-38, %v665
      %v667 = vsel %vm664, %v666, %v662
      %v668 = vmul.f32 %v589, %v667
      %v669 = vrcp.pop %v611
      %v670 = vmul.f32 %v611, %v669
      %v671 = vsub.f32 1.0, %v670
      %v672 = vmul.f32 %v669, %v671
      %v673 = vadd.f32 %v669, %v672
      %vm674 = vweird.f32 %v611
      %vm675 = vweird.f32 %v669
      %vm676 = vmor %vm674, %vm675
      %v677 = vsel %vm676, %v669, %v673
      %v678 = vand.u32 2147483647, %v611
      %vm679 = vcmp.eq.f32.partialorder %v678, 8.507059e+37
      %v680 = vand.u32 %v611, 2147483648
      %v681 = vor.u32 1.1754944e-38, %v680
      %v682 = vsel %vm679, %v681, %v677
      %v683 = vmul.f32 %v591, %v682
      %v684 = vrcp.pop %v614
      %v685 = vmul.f32 %v614, %v684
      %v686 = vsub.f32 1.0, %v685
      %v687 = vmul.f32 %v684, %v686
      %v688 = vadd.f32 %v684, %v687
      %vm689 = vweird.f32 %v614
      %vm690 = vweird.f32 %v684
      %vm691 = vmor %vm689, %vm690
      %v692 = vsel %vm691, %v684, %v688
      %v693 = vand.u32 2147483647, %v614
      %vm694 = vcmp.eq.f32.partialorder %v693, 8.507059e+37
      %v695 = vand.u32 %v614, 2147483648
      %v696 = vor.u32 1.1754944e-38, %v695
      %v697 = vsel %vm694, %v696, %v692
      %v698 = vmul.f32 %v593, %v697
      %v699 = vrcp.pop %v617
      %v700 = vmul.f32 %v617, %v699
      %v701 = vsub.f32 1.0, %v700
      %v702 = vmul.f32 %v699, %v701
      %v703 = vadd.f32 %v699, %v702
      %vm704 = vweird.f32 %v617
      %vm705 = vweird.f32 %v699
      %vm706 = vmor %vm704, %vm705
      %v707 = vsel %vm706, %v699, %v703
      %v708 = vand.u32 2147483647, %v617
      %vm709 = vcmp.eq.f32.partialorder %v708, 8.507059e+37
      %v710 = vand.u32 %v617, 2147483648
      %v711 = vor.u32 1.1754944e-38, %v710
      %v712 = vsel %vm709, %v711, %v707
      %v713 = vmul.f32 %v595, %v712
      %v714 = vrcp.pop %v620
      %v715 = vmul.f32 %v620, %v714
      %v716 = vsub.f32 1.0, %v715
      %v717 = vmul.f32 %v714, %v716
      %v718 = vadd.f32 %v714, %v717
      %vm719 = vweird.f32 %v620
      %vm720 = vweird.f32 %v714
      %vm721 = vmor %vm719, %vm720
      %v722 = vsel %vm721, %v714, %v718
      %v723 = vand.u32 2147483647, %v620
      %vm724 = vcmp.eq.f32.partialorder %v723, 8.507059e+37
      %v725 = vand.u32 %v620, 2147483648
      %v726 = vor.u32 1.1754944e-38, %v725
      %v727 = vsel %vm724, %v726, %v722
      %v728 = vmul.f32 %v597, %v727
      %v729 = vrcp.pop %v623
      %v730 = vmul.f32 %v623, %v729
      %v731 = vsub.f32 1.0, %v730
      %v732 = vmul.f32 %v729, %v731
      %v733 = vadd.f32 %v729, %v732
      %vm734 = vweird.f32 %v623
      %vm735 = vweird.f32 %v729
      %vm736 = vmor %vm734, %vm735
      %v737 = vsel %vm736, %v729, %v733
      %v738 = vand.u32 2147483647, %v623
      %vm739 = vcmp.eq.f32.partialorder %v738, 8.507059e+37
      %v740 = vand.u32 %v623, 2147483648
      %v741 = vor.u32 1.1754944e-38, %v740
      %v742 = vsel %vm739, %v741, %v737
      %v743 = vmul.f32 %v599, %v742
      %v744 = vsel %vm343, %v638, 0.0
      %v745 = vsel %vm343, %v653, 0.0
      %v746 = vadd.f32 %v744, %v745
      %v747 = vsel %vm343, %v668, 0.0
      %v748 = vadd.f32 %v746, %v747
      %v749 = vsel %vm343, %v683, 0.0
      %v750 = vadd.f32 %v748, %v749
      %v751 = vsel %vm343, %v698, 0.0
      %v752 = vsel %vm343, %v713, 0.0
      %v753 = vadd.f32 %v751, %v752
      %v754 = vsel %vm343, %v728, 0.0
      %v755 = vadd.f32 %v753, %v754
      %v756 = vsel %vm343, %v743, 0.0
      %v757 = vadd.f32 %v755, %v756
      %v758 = vrcp.pop 4.0
      %v759 = vmul.f32 4.0, %v758
      %v760 = vsub.f32 1.0, %v759
      %v761 = vmul.f32 %v758, %v760
      %v762 = vadd.f32 %v758, %v761
      %vm763 = vweird.f32 %v758
      %v764 = vsel %vm763, %v758, %v762
      %v765 = vmul.f32 %v750, %v764
      %v766 = vmul.f32 %v757, %v764
      %767 = vst.msk [vmem:[%s307] sm:$0xff] %vm343, %v765
      %768 = vst.msk [vmem:[%s307 + $0x8] sm:$0xff] %vm343, %v766
      %v769 = vld [vmem:[%s297] sm:$0xff]
      %v770 = vld [vmem:[%s297 + $0x8] sm:$0xff]
      %v771 = vld [vmem:[%s297 + $0x10] sm:$0xff]
      %v772 = vld [vmem:[%s297 + $0x18] sm:$0xff]
      %v773 = vld [vmem:[%s297 + $0x20] sm:$0xff]
      %v774 = vld [vmem:[%s297 + $0x28] sm:$0xff]
      %v775 = vld [vmem:[%s297 + $0x30] sm:$0xff]
      %v776 = vld [vmem:[%s297 + $0x38] sm:$0xff]
      %v778 = vsel %vm343, %v638, 0
      %780 = vmatpush.msra.mxu0 0.0
      %781 = vmatpush.msra.mxu0 0.0
      %782 = vmatpush.msra.mxu0 0.0
      %783 = vmatpush.msra.mxu0 0.0
      %784 = vmatpush.msra.mxu0 0.0
      %785 = vmatpush.msra.mxu0 0.0
      %786 = vmatpush.msra.mxu0 0.0
      %787 = vmatpush.msra.mxu0 0.0
      %788 = vmatpush.msra.mxu0 0.0
      %789 = vmatpush.msra.mxu0 0.0
      %790 = vmatpush.msra.mxu0 0.0
      %791 = vmatpush.msra.mxu0 0.0
      %792 = vmatpush.msra.mxu0 0.0
      %793 = vmatpush.msra.mxu0 0.0
      %794 = vmatpush.msra.mxu0 0.0
      %795 = vmatpush.msra.mxu0 %v769
      %796 = vmatmul.f32.gmra.mxu0 %v778
      %v797 = vpop.f32.mrf.mxu0
      %v798 = vadd.f32 0.0, %v797
      %799 = vdwg.mxu0
      %v801 = vsel %vm343, %v653, 0
      %803 = vmatpush.msra.mxu0 0.0
      %804 = vmatpush.msra.mxu0 0.0
      %805 = vmatpush.msra.mxu0 0.0
      %806 = vmatpush.msra.mxu0 0.0
      %807 = vmatpush.msra.mxu0 0.0
      %808 = vmatpush.msra.mxu0 0.0
      %809 = vmatpush.msra.mxu0 0.0
      %810 = vmatpush.msra.mxu0 0.0
      %811 = vmatpush.msra.mxu0 0.0
      %812 = vmatpush.msra.mxu0 0.0
      %813 = vmatpush.msra.mxu0 0.0
      %814 = vmatpush.msra.mxu0 0.0
      %815 = vmatpush.msra.mxu0 0.0
      %816 = vmatpush.msra.mxu0 0.0
      %817 = vmatpush.msra.mxu0 0.0
      %818 = vmatpush.msra.mxu0 %v770
      %819 = vmatmul.f32.gmra.mxu0 %v801
      %v820 = vpop.f32.mrf.mxu0
      %v821 = vadd.f32 0.0, %v820
      %822 = vdwg.mxu0
      %v824 = vsel %vm343, %v668, 0
      %826 = vmatpush.msra.mxu0 0.0
      %827 = vmatpush.msra.mxu0 0.0
      %828 = vmatpush.msra.mxu0 0.0
      %829 = vmatpush.msra.mxu0 0.0
      %830 = vmatpush.msra.mxu0 0.0
      %831 = vmatpush.msra.mxu0 0.0
      %832 = vmatpush.msra.mxu0 0.0
      %833 = vmatpush.msra.mxu0 0.0
      %834 = vmatpush.msra.mxu0 0.0
      %835 = vmatpush.msra.mxu0 0.0
      %836 = vmatpush.msra.mxu0 0.0
      %837 = vmatpush.msra.mxu0 0.0
      %838 = vmatpush.msra.mxu0 0.0
      %839 = vmatpush.msra.mxu0 0.0
      %840 = vmatpush.msra.mxu0 0.0
      %841 = vmatpush.msra.mxu0 %v771
      %842 = vmatmul.f32.gmra.mxu0 %v824
      %v843 = vpop.f32.mrf.mxu0
      %v844 = vadd.f32 0.0, %v843
      %845 = vdwg.mxu0
      %v847 = vsel %vm343, %v683, 0
      %849 = vmatpush.msra.mxu0 0.0
      %850 = vmatpush.msra.mxu0 0.0
      %851 = vmatpush.msra.mxu0 0.0
      %852 = vmatpush.msra.mxu0 0.0
      %853 = vmatpush.msra.mxu0 0.0
      %854 = vmatpush.msra.mxu0 0.0
      %855 = vmatpush.msra.mxu0 0.0
      %856 = vmatpush.msra.mxu0 0.0
      %857 = vmatpush.msra.mxu0 0.0
      %858 = vmatpush.msra.mxu0 0.0
      %859 = vmatpush.msra.mxu0 0.0
      %860 = vmatpush.msra.mxu0 0.0
      %861 = vmatpush.msra.mxu0 0.0
      %862 = vmatpush.msra.mxu0 0.0
      %863 = vmatpush.msra.mxu0 0.0
      %864 = vmatpush.msra.mxu0 %v772
      %865 = vmatmul.f32.gmra.mxu0 %v847
      %v866 = vpop.f32.mrf.mxu0
      %v867 = vadd.f32 0.0, %v866
      %868 = vdwg.mxu0
      %v870 = vsel %vm343, %v698, 0
      %872 = vmatpush.msra.mxu0 0.0
      %873 = vmatpush.msra.mxu0 0.0
      %874 = vmatpush.msra.mxu0 0.0
      %875 = vmatpush.msra.mxu0 0.0
      %876 = vmatpush.msra.mxu0 0.0
      %877 = vmatpush.msra.mxu0 0.0
      %878 = vmatpush.msra.mxu0 0.0
      %879 = vmatpush.msra.mxu0 0.0
      %880 = vmatpush.msra.mxu0 0.0
      %881 = vmatpush.msra.mxu0 0.0
      %882 = vmatpush.msra.mxu0 0.0
      %883 = vmatpush.msra.mxu0 0.0
      %884 = vmatpush.msra.mxu0 0.0
      %885 = vmatpush.msra.mxu0 0.0
      %886 = vmatpush.msra.mxu0 0.0
      %887 = vmatpush.msra.mxu0 %v773
      %888 = vmatmul.f32.gmra.mxu0 %v870
      %v889 = vpop.f32.mrf.mxu0
      %v890 = vadd.f32 0.0, %v889
      %891 = vdwg.mxu0
      %v893 = vsel %vm343, %v713, 0
      %895 = vmatpush.msra.mxu0 0.0
      %896 = vmatpush.msra.mxu0 0.0
      %897 = vmatpush.msra.mxu0 0.0
      %898 = vmatpush.msra.mxu0 0.0
      %899 = vmatpush.msra.mxu0 0.0
      %900 = vmatpush.msra.mxu0 0.0
      %901 = vmatpush.msra.mxu0 0.0
      %902 = vmatpush.msra.mxu0 0.0
      %903 = vmatpush.msra.mxu0 0.0
      %904 = vmatpush.msra.mxu0 0.0
      %905 = vmatpush.msra.mxu0 0.0
      %906 = vmatpush.msra.mxu0 0.0
      %907 = vmatpush.msra.mxu0 0.0
      %908 = vmatpush.msra.mxu0 0.0
      %909 = vmatpush.msra.mxu0 0.0
      %910 = vmatpush.msra.mxu0 %v774
      %911 = vmatmul.f32.gmra.mxu0 %v893
      %v912 = vpop.f32.mrf.mxu0
      %v913 = vadd.f32 0.0, %v912
      %914 = vdwg.mxu0
      %v916 = vsel %vm343, %v728, 0
      %918 = vmatpush.msra.mxu0 0.0
      %919 = vmatpush.msra.mxu0 0.0
      %920 = vmatpush.msra.mxu0 0.0
      %921 = vmatpush.msra.mxu0 0.0
      %922 = vmatpush.msra.mxu0 0.0
      %923 = vmatpush.msra.mxu0 0.0
      %924 = vmatpush.msra.mxu0 0.0
      %925 = vmatpush.msra.mxu0 0.0
      %926 = vmatpush.msra.mxu0 0.0
      %927 = vmatpush.msra.mxu0 0.0
      %928 = vmatpush.msra.mxu0 0.0
      %929 = vmatpush.msra.mxu0 0.0
      %930 = vmatpush.msra.mxu0 0.0
      %931 = vmatpush.msra.mxu0 0.0
      %932 = vmatpush.msra.mxu0 0.0
      %933 = vmatpush.msra.mxu0 %v775
      %934 = vmatmul.f32.gmra.mxu0 %v916
      %v935 = vpop.f32.mrf.mxu0
      %v936 = vadd.f32 0.0, %v935
      %937 = vdwg.mxu0
      %v939 = vsel %vm343, %v743, 0
      %941 = vmatpush.msra.mxu0 0.0
      %942 = vmatpush.msra.mxu0 0.0
      %943 = vmatpush.msra.mxu0 0.0
      %944 = vmatpush.msra.mxu0 0.0
      %945 = vmatpush.msra.mxu0 0.0
      %946 = vmatpush.msra.mxu0 0.0
      %947 = vmatpush.msra.mxu0 0.0
      %948 = vmatpush.msra.mxu0 0.0
      %949 = vmatpush.msra.mxu0 0.0
      %950 = vmatpush.msra.mxu0 0.0
      %951 = vmatpush.msra.mxu0 0.0
      %952 = vmatpush.msra.mxu0 0.0
      %953 = vmatpush.msra.mxu0 0.0
      %954 = vmatpush.msra.mxu0 0.0
      %955 = vmatpush.msra.mxu0 0.0
      %956 = vmatpush.msra.mxu0 %v776
      %957 = vmatmul.f32.gmra.mxu0 %v939
      %v958 = vpop.f32.mrf.mxu0
      %v959 = vadd.f32 0.0, %v958
      %960 = vdwg.mxu0
      %961 = vst.msk [vmem:[%s317] sm:$0xff] %vm343, %v798
      %962 = vst.msk [vmem:[%s317 + $0x8] sm:$0xff] %vm343, %v821
      %963 = vst.msk [vmem:[%s317 + $0x10] sm:$0xff] %vm343, %v844
      %964 = vst.msk [vmem:[%s317 + $0x18] sm:$0xff] %vm343, %v867
      %965 = vst.msk [vmem:[%s317 + $0x20] sm:$0xff] %vm343, %v890
      %966 = vst.msk [vmem:[%s317 + $0x28] sm:$0xff] %vm343, %v913
      %967 = vst.msk [vmem:[%s317 + $0x30] sm:$0xff] %vm343, %v936
      %968 = vst.msk [vmem:[%s317 + $0x38] sm:$0xff] %vm343, %v959
      %s969 = smul.u32 2, %s21
      %p970 = scmp.lt.s32.totalorder %s20, 2
      %s971 = scalar_select %p970, %s20, 2
      %p972 = scmp.lt.s32.totalorder %s969, 1
      %s973 = scalar_select %p972, %s969, 1
      %s974 = smul.addr %s971, 2
      %s975 = sadd.s32 %s973, %s974
      %s976 = smul.addr %s975, 8
      %s977 = scalar_lea.vmem %s3, %s976
      %s978 = smul.u32 8, %s21
      %p979 = scmp.lt.s32.totalorder %s20, 2
      %s980 = scalar_select %p979, %s20, 2
      %p981 = scmp.lt.s32.totalorder %s978, 7
      %s982 = scalar_select %p981, %s978, 7
      %s983 = smul.addr %s980, 8
      %s984 = sadd.s32 %s982, %s983
      %s985 = smul.addr %s984, 8
      %s986 = scalar_lea.vmem %s4, %s985
      // Predicated region
      $region33: #{lora_mha_forward.8} parent=31 // pred_check
        %p987 = pneg %p130
      $region34: #{lora_mha_forward.8} parent=31 // pred_check_branch
        %989 = sbr.rel (%p987) target = $region36
      $region35: #{lora_mha_forward.8} parent=31 // pred_region
        %s990 = smul.u32 2, %s21
      $region36: #{lora_mha_forward.8} parent=31 // pred_fallthru
        _
      // Predicated region
      $region37: #{lora_mha_forward.8} parent=31 // pred_check
        %p991 = pneg %p158
      $region38: #{lora_mha_forward.8} parent=31 // pred_check_branch
        %993 = sbr.rel (%p991) target = $region40
      $region39: #{lora_mha_forward.8} parent=31 // pred_region
        %s994 = smul.u32 8, %s21
      $region40: #{lora_mha_forward.8} parent=31 // pred_fallthru
        _
    $region32: #{lora_mha_forward.8} parent=5 // pred_fallthru
      _
    %p995 = scmp.le.s32.totalorder 2, %s11
    // Predicated region
    $region41: #{lora_mha_forward.8} parent=5 // pred_check
      %p996 = pneg %p995
    $region42: #{lora_mha_forward.8} parent=5 // pred_check_branch
      %998 = sbr.rel (%p996) target = $region44
    $region43: #{lora_mha_forward.8} parent=5 // pred_region
      %s999 = ssub.s32 %s11, 2
      // Predicated region
      $region45: #{lora_mha_forward.8} parent=43 // pred_check
        %p1000 = pneg %p136
      $region46: #{lora_mha_forward.8} parent=43 // pred_check_branch
        %1002 = sbr.rel (%p1000) target = $region48
      $region47: #{lora_mha_forward.8} parent=43 // pred_region
        %s1003 = smul.u32 2, %s23
        %p1004 = scmp.lt.s32.totalorder %s22, 2
        %s1005 = scalar_select %p1004, %s22, 2
        %p1006 = scmp.lt.s32.totalorder %s1003, 1
        %s1007 = scalar_select %p1006, %s1003, 1
        %s1008 = smul.addr %s1005, 2
        %s1009 = sadd.s32 %s1007, %s1008
        %s1010 = smul.addr %s1009, 8
        %s1011 = scalar_lea.vmem %s3, %s1010
      $region48: #{lora_mha_forward.8} parent=43 // pred_fallthru
        _
      // Predicated region
      $region49: #{lora_mha_forward.8} parent=43 // pred_check
        %p1012 = pneg %p164
      $region50: #{lora_mha_forward.8} parent=43 // pred_check_branch
        %1014 = sbr.rel (%p1012) target = $region52
      $region51: #{lora_mha_forward.8} parent=43 // pred_region
        %s1015 = smul.u32 8, %s23
        %p1016 = scmp.lt.s32.totalorder %s22, 2
        %s1017 = scalar_select %p1016, %s22, 2
        %p1018 = scmp.lt.s32.totalorder %s1015, 7
        %s1019 = scalar_select %p1018, %s1015, 7
        %s1020 = smul.addr %s1017, 8
        %s1021 = sadd.s32 %s1019, %s1020
        %s1022 = smul.addr %s1021, 8
        %s1023 = scalar_lea.vmem %s4, %s1022
      $region52: #{lora_mha_forward.8} parent=43 // pred_fallthru
        _
    $region44: #{lora_mha_forward.8} parent=5 // pred_fallthru
      _
  $region6: #{lora_mha_forward.8} parent=0 // loop_footer
    %s15 = sadd.s32 1, %s11
  $region7: #{lora_mha_forward.8} parent=0 // loop_footer_branch
    %10 = sbr.rel target = $region3
  $region8: #{lora_mha_forward.8} parent=0 // loop_exit
    _

</llo_original>
